<compile_context>
chip_gen: v6e
topology: v6e:2x2x1
jax: 0.10.0
libtpu: 0.0.40
codegen_flags: <defaults>
</compile_context>

<pallas_src>
import numpy as np
import jax
import jax.numpy as jnp
from jax.experimental import pallas as pl
from jax.experimental.pallas import tpu as pltpu

# ----------------------------- config -----------------------------------------
src_vocab_size = 16
src_len = 8            # positional table has src_len + 1 rows
d_model = 32
d_ff = 64
d_k = 16
d_v = 16
n_heads = 4
n_layers = 2
LN_EPS = 1e-5          # PyTorch nn.LayerNorm default
NEG_INF = -1e9


# ----------------------------- kernel: one (batch, layer) grid step ------------
def encoder_kernel(x_ref, bias_ref,
                   wq_ref, bq_ref, wk_ref, bk_ref, wv_ref, bv_ref,
                   wo_ref, bo_ref, ln1g_ref, ln1b_ref,
                   w1_ref, b1_ref, w2_ref, b2_ref, ln2g_ref, ln2b_ref,
                   out_ref, attn_ref):
    """One encoder layer for one batch element.  grid = (B, n_layers); the
    activation is carried across the layer axis in out_ref (same output block
    for every l -> stays resident in VMEM)."""
    l = pl.program_id(1)
    _, S, D = x_ref.shape
    H = n_heads

    @pl.when(l == 0)
    def _init():                       # seed the carried activation with the input
        out_ref[...] = x_ref[...]

    x = out_ref[0]                     # (S, D) f32 activation carried across layers

    def layer_norm(y, g, b):           # single-pass: var = E[y^2] - mu^2
        mu = jnp.mean(y, axis=-1, keepdims=True)
        ms = jnp.mean(y * y, axis=-1, keepdims=True)
        return (y - mu) * jax.lax.rsqrt(ms - mu * mu + LN_EPS) * g + b

    def bf(a):                         # bf16 only at MXU operand boundaries
        return a.astype(jnp.bfloat16)

    # ---------------- multi-head self-attention (fully head-batched) ----------
    # 1/sqrt(d_k) is already folded into wq / bq at parameter-prep time.
    xh = jnp.broadcast_to(bf(x)[None], (H, S, D))                       # (H, S, D) bf16
    qh = jnp.einsum('hnd,hdk->hnk', xh, bf(wq_ref[0]),
                    preferred_element_type=jnp.float32) + bq_ref[0]     # (H, S, d_k)
    kh = jnp.einsum('hnd,hdk->hnk', xh, bf(wk_ref[0]),
                    preferred_element_type=jnp.float32) + bk_ref[0]     # (H, S, d_k)
    vh = jnp.einsum('hnd,hdk->hnk', xh, bf(wv_ref[0]),
                    preferred_element_type=jnp.float32) + bv_ref[0]     # (H, S, d_v)

    s = jnp.einsum('hqd,hkd->hqk', bf(qh), bf(kh),
                   preferred_element_type=jnp.float32)                  # (H, S, S)
    s = s + bias_ref[0]                # (1, S) additive pad bias, implicit broadcast

    m = jnp.max(s, axis=-1, keepdims=True)                              # f32 softmax
    e = jnp.exp(s - m)
    p = e / jnp.sum(e, axis=-1, keepdims=True)

    attn_ref[0, 0] = p                 # dense (H, S, S) store for this (batch, layer)

    ctx = jnp.einsum('hqk,hkd->hqd', bf(p), bf(vh),
                     preferred_element_type=jnp.float32)                # (H, S, d_v)

    # Output projection with the head-concat folded into head-major W_O (H, d_v, D).
    o = jnp.sum(jnp.einsum('hnd,hde->hne', bf(ctx), bf(wo_ref[0]),
                           preferred_element_type=jnp.float32), axis=0)
    o = o + bo_ref[0]                                                   # (S, D)

    x = layer_norm(o + x, ln1g_ref[0], ln1b_ref[0])                     # residual + LN

    # ---------------- position-wise FFN (kernel_size=1 convs == matmuls) ------
    h1 = jnp.dot(bf(x), bf(w1_ref[0]), preferred_element_type=jnp.float32) + b1_ref[0]
    h1 = jnp.maximum(h1, 0.0)                                           # ReLU (f32)
    o2 = jnp.dot(bf(h1), bf(w2_ref[0]), preferred_element_type=jnp.float32) + b2_ref[0]

    x = layer_norm(o2 + x, ln2g_ref[0], ln2b_ref[0])                    # residual + LN

    out_ref[0] = x


# ----------------------------- wrapper ------------------------------------------
def _layer_spec(arr):
    """One layer's slice of a stacked (L, ...) parameter, indexed by the layer axis."""
    nz = arr.ndim - 1
    return pl.BlockSpec((1,) + tuple(arr.shape[1:]),
                        lambda b, l, _nz=nz: (l,) + (0,) * _nz)


def encoder_pallas(x, attn_bias, p):
    B, S, D = x.shape
    L, H = n_layers, n_heads

    in_specs = [
        pl.BlockSpec((1, S, D), lambda b, l: (b, 0, 0)),     # x (per batch)
        pl.BlockSpec((1, 1, S), lambda b, l: (b, 0, 0)),     # additive pad bias (per batch)
        _layer_spec(p['wq']), _layer_spec(p['bq']),
        _layer_spec(p['wk']), _layer_spec(p['bk']),
        _layer_spec(p['wv']), _layer_spec(p['bv']),
        _layer_spec(p['wo']), _layer_spec(p['bo']),
        _layer_spec(p['ln1_g']), _layer_spec(p['ln1_b']),
        _layer_spec(p['w1']), _layer_spec(p['b1']),
        _layer_spec(p['w2']), _layer_spec(p['b2']),
        _layer_spec(p['ln2_g']), _layer_spec(p['ln2_b']),
    ]
    out_specs = (
        # Activation: same block for every layer -> VMEM-resident accumulator.
        pl.BlockSpec((1, S, D), lambda b, l: (b, 0, 0)),
        # Attention maps: one dense block per (batch, layer).
        pl.BlockSpec((1, 1, H, S, S), lambda b, l: (b, l, 0, 0, 0)),
    )
    out_shape = (
        jax.ShapeDtypeStruct((B, S, D), jnp.float32),
        jax.ShapeDtypeStruct((B, L, H, S, S), jnp.float32),
    )
    out, attn = pl.pallas_call(
        encoder_kernel,
        grid=(B, L),
        in_specs=in_specs,
        out_specs=out_specs,
        out_shape=out_shape,
        compiler_params=pltpu.CompilerParams(
            dimension_semantics=("parallel", "arbitrary"),
            vmem_limit_bytes=32 * 1024 * 1024),
    )(x, attn_bias,
      p['wq'], p['bq'], p['wk'], p['bk'], p['wv'], p['bv'],
      p['wo'], p['bo'], p['ln1_g'], p['ln1_b'],
      p['w1'], p['b1'], p['w2'], p['b2'], p['ln2_g'], p['ln2_b'])
    return out, attn


# ----------------------------- parameters ---------------------------------------
def get_sinusoid_encoding_table(n_position, d_model_):
    pos = np.arange(n_position)[:, None].astype(np.float64)
    hid = np.arange(d_model_)[None, :]
    angle = pos / np.power(10000, 2 * (hid // 2) / d_model_)
    table = np.zeros((n_position, d_model_), dtype=np.float64)
    table[:, 0::2] = np.sin(angle[:, 0::2])
    table[:, 1::2] = np.cos(angle[:, 1::2])
    return jnp.asarray(table, dtype=jnp.float32)


def init_params(key):
    def nrm(k, shape, scale=0.1):
        return (jax.random.normal(k, shape, jnp.float32) * scale).astype(jnp.float32)

    L, H = n_layers, n_heads
    keys = jax.random.split(key, 11)
    inv_sqrt_dk = np.float32(1.0 / np.sqrt(d_k))
    return {
        'src_emb': nrm(keys[0], (src_vocab_size, d_model), 1.0),
        'pos_table': get_sinusoid_encoding_table(src_len + 1, d_model),
        # attention projections, stored head-major; 1/sqrt(d_k) folded into Q weight/bias
        'wq': nrm(keys[1], (L, H, d_model, d_k)) * inv_sqrt_dk,
        'bq': nrm(keys[2], (L, H, 1, d_k), 0.01) * inv_sqrt_dk,
        'wk': nrm(keys[3], (L, H, d_model, d_k)),
        'bk': nrm(keys[4], (L, H, 1, d_k), 0.01),
        'wv': nrm(keys[5], (L, H, d_model, d_v)),
        'bv': nrm(keys[6], (L, H, 1, d_v), 0.01),
        'wo': nrm(keys[7], (L, H, d_v, d_model)),     # output proj as (head, d_v, d_model)
        'bo': nrm(keys[8], (L, 1, d_model), 0.01),
        'ln1_g': jnp.ones((L, 1, d_model), jnp.float32),
        'ln1_b': jnp.zeros((L, 1, d_model), jnp.float32),
        # position-wise FFN (two kernel_size=1 convs == matmuls)
        'w1': nrm(keys[9], (L, d_model, d_ff)),
        'b1': jnp.zeros((L, 1, d_ff), jnp.float32),
        'w2': nrm(keys[10], (L, d_ff, d_model)),
        'b2': jnp.zeros((L, 1, d_model), jnp.float32),
        'ln2_g': jnp.ones((L, 1, d_model), jnp.float32),
        'ln2_b': jnp.zeros((L, 1, d_model), jnp.float32),
    }


def build_attn_bias(enc_inputs):
    """Additive (-1e9 / 0) per-batch key bias (B, 1, S): same semantics as
    get_attn_pad_mask + masked_fill_(-1e9); broadcast over queries inside the kernel."""
    key_is_pad = (enc_inputs == 0)                               # (B, S)
    return jnp.where(key_is_pad[:, None, :], NEG_INF, 0.0).astype(jnp.float32)


# ----------------------------- encoder forward -----------------------------------
@jax.jit
def encoder_forward(enc_inputs, params):
    # Embedding gathers (glue in plain JAX).  As in the reference code the
    # positional table is indexed by the *token ids* themselves (quirk preserved).
    src_emb = params['src_emb'][enc_inputs]                      # (B, S, D)
    pos_emb = params['pos_table'][enc_inputs]                    # (B, S, D)
    x = (src_emb + pos_emb).astype(jnp.float32)

    attn_bias = build_attn_bias(enc_inputs)                      # (B, 1, S)
    out, attn = encoder_pallas(x, attn_bias, params)             # attn: (B, L, H, S, S)
    return out, [attn[:, l] for l in range(n_layers)]


# ----------------------------- main ----------------------------------------------
if __name__ == "__main__":
    key = jax.random.PRNGKey(0)
    pkey, dkey = jax.random.split(key)
    params = init_params(pkey)

    batch = 2
    seq = src_len
    # token ids in [1, src_len] (pos table has src_len+1 rows); add padding zeros.
    enc_inputs = jax.random.randint(dkey, (batch, seq), 1, src_len + 1, dtype=jnp.int32)
    enc_inputs = enc_inputs.at[:, -2:].set(0)   # trailing pad tokens exercise the mask

    out, attns = encoder_forward(enc_inputs, params)
    jax.block_until_ready(out)
    for a in attns:
        jax.block_until_ready(a)

    assert out.shape == (batch, seq, d_model)
    assert len(attns) == n_layers
    assert attns[0].shape == (batch, n_heads, seq, seq)
    assert bool(jnp.all(jnp.isfinite(out)))
    # every attention row is a probability distribution over (unmasked) keys
    row_sums = jnp.sum(attns[0], axis=-1)
    assert bool(jnp.all(jnp.abs(row_sums - 1.0) < 1e-3))
    print("KERNEL_OK")
</pallas_src>

<mosaic_0001>
module attributes {stable_mosaic.version = 11 : i64} {
  func.func @encoder_kernel(%arg0: i32, %arg1: i32, %arg2: memref<1x8x32xf32, #tpu.memory_space<vmem>>, %arg3: memref<1x1x8xf32, #tpu.memory_space<vmem>>, %arg4: memref<1x4x32x16xf32, #tpu.memory_space<vmem>>, %arg5: memref<1x4x1x16xf32, #tpu.memory_space<vmem>>, %arg6: memref<1x4x32x16xf32, #tpu.memory_space<vmem>>, %arg7: memref<1x4x1x16xf32, #tpu.memory_space<vmem>>, %arg8: memref<1x4x32x16xf32, #tpu.memory_space<vmem>>, %arg9: memref<1x4x1x16xf32, #tpu.memory_space<vmem>>, %arg10: memref<1x4x16x32xf32, #tpu.memory_space<vmem>>, %arg11: memref<1x1x32xf32, #tpu.memory_space<vmem>>, %arg12: memref<1x1x32xf32, #tpu.memory_space<vmem>>, %arg13: memref<1x1x32xf32, #tpu.memory_space<vmem>>, %arg14: memref<1x32x64xf32, #tpu.memory_space<vmem>>, %arg15: memref<1x1x64xf32, #tpu.memory_space<vmem>>, %arg16: memref<1x64x32xf32, #tpu.memory_space<vmem>>, %arg17: memref<1x1x32xf32, #tpu.memory_space<vmem>>, %arg18: memref<1x1x32xf32, #tpu.memory_space<vmem>>, %arg19: memref<1x1x32xf32, #tpu.memory_space<vmem>>, %arg20: memref<1x8x32xf32, #tpu.memory_space<vmem>>, %arg21: memref<1x1x4x8x8xf32, #tpu.memory_space<vmem>>) attributes {dimension_semantics = [#tpu.dimension_semantics<parallel>, #tpu.dimension_semantics<arbitrary>], iteration_bounds = array<i64: 2, 2>, scalar_prefetch = 0 : i64, scratch_operands = 0 : i64, tpu.core_type = #tpu.core_type<tc>, window_params = [{transform_indices = @transform_0, window_bounds = array<i64: 1, 8, 32>}, {transform_indices = @transform_1, window_bounds = array<i64: 1, 1, 8>}, {transform_indices = @transform_2, window_bounds = array<i64: 1, 4, 32, 16>}, {transform_indices = @transform_3, window_bounds = array<i64: 1, 4, 1, 16>}, {transform_indices = @transform_4, window_bounds = array<i64: 1, 4, 32, 16>}, {transform_indices = @transform_5, window_bounds = array<i64: 1, 4, 1, 16>}, {transform_indices = @transform_6, window_bounds = array<i64: 1, 4, 32, 16>}, {transform_indices = @transform_7, window_bounds = array<i64: 1, 4, 1, 16>}, {transform_indices = @transform_8, window_bounds = array<i64: 1, 4, 16, 32>}, {transform_indices = @transform_9, window_bounds = array<i64: 1, 1, 32>}, {transform_indices = @transform_10, window_bounds = array<i64: 1, 1, 32>}, {transform_indices = @transform_11, window_bounds = array<i64: 1, 1, 32>}, {transform_indices = @transform_12, window_bounds = array<i64: 1, 32, 64>}, {transform_indices = @transform_13, window_bounds = array<i64: 1, 1, 64>}, {transform_indices = @transform_14, window_bounds = array<i64: 1, 64, 32>}, {transform_indices = @transform_15, window_bounds = array<i64: 1, 1, 32>}, {transform_indices = @transform_16, window_bounds = array<i64: 1, 1, 32>}, {transform_indices = @transform_17, window_bounds = array<i64: 1, 1, 32>}, {transform_indices = @transform_18, window_bounds = array<i64: 1, 8, 32>}, {transform_indices = @transform_19, window_bounds = array<i64: 1, 1, 4, 8, 8>}]} {
    %c0_i32 = arith.constant 0 : i32
    %0 = arith.cmpi eq, %arg1, %c0_i32 : i32
    %1 = arith.extui %0 : i1 to i32
    %c0_i32_0 = arith.constant 0 : i32
    %2 = arith.cmpi ne, %1, %c0_i32_0 : i32
    scf.if %2 {
      %c0_90 = arith.constant 0 : index
      %c0_91 = arith.constant 0 : index
      %c0_92 = arith.constant 0 : index
      %143 = vector.load %arg2[%c0_90, %c0_91, %c0_92] : memref<1x8x32xf32, #tpu.memory_space<vmem>>, vector<1x8x32xf32>
      %c0_93 = arith.constant 0 : index
      %c0_94 = arith.constant 0 : index
      %c0_95 = arith.constant 0 : index
      %144 = vector.load %arg20[%c0_93, %c0_94, %c0_95] : memref<1x8x32xf32, #tpu.memory_space<vmem>>, vector<1x8x32xf32>
      tpu.vector_store %arg20[%c0_93, %c0_94, %c0_95], %143 {strides = array<i32>} : memref<1x8x32xf32, #tpu.memory_space<vmem>>, vector<1x8x32xf32>,
    } else {
    }
    %c0 = arith.constant 0 : index
    %c0_1 = arith.constant 0 : index
    %c0_2 = arith.constant 0 : index
    %3 = vector.load %arg20[%c0, %c0_1, %c0_2] : memref<1x8x32xf32, #tpu.memory_space<vmem>>, vector<1x8x32xf32>
    %4 = vector.shape_cast %3 : vector<1x8x32xf32> to vector<8x32xf32>
    %5 = arith.truncf %4 : vector<8x32xf32> to vector<8x32xbf16>
    %6 = vector.shape_cast %5 : vector<8x32xbf16> to vector<1x8x32xbf16>
    %7 = vector.shape_cast %6 : vector<1x8x32xbf16> to vector<1x8x32xbf16>
    %8 = vector.broadcast %7 : vector<1x8x32xbf16> to vector<4x8x32xbf16>
    %c0_3 = arith.constant 0 : index
    %c0_4 = arith.constant 0 : index
    %c0_5 = arith.constant 0 : index
    %c0_6 = arith.constant 0 : index
    %9 = vector.load %arg4[%c0_3, %c0_4, %c0_5, %c0_6] : memref<1x4x32x16xf32, #tpu.memory_space<vmem>>, vector<1x4x32x16xf32>
    %10 = vector.shape_cast %9 : vector<1x4x32x16xf32> to vector<4x32x16xf32>
    %11 = arith.truncf %10 : vector<4x32x16xf32> to vector<4x32x16xbf16>
    "tpu.trace_start"() <{level = 10 : i32, message = "hnd,hdk->hnk"}> : () -> ()
    %cst = arith.constant dense<0.000000e+00> : vector<4x8x16xf32>
    %12 = tpu.matmul %8, %11, %cst {dimension_numbers = #tpu.dot_dimension_numbers<[2], [1], [1], [2], [0, 0, 0, 1, 1, 2], [0], [0]>} : vector<4x8x32xbf16>, vector<4x32x16xbf16>, vector<4x8x16xf32> -> vector<4x8x16xf32>
    "tpu.trace_stop"() : () -> ()
    %c0_7 = arith.constant 0 : index
    %c0_8 = arith.constant 0 : index
    %c0_9 = arith.constant 0 : index
    %c0_10 = arith.constant 0 : index
    %13 = vector.load %arg5[%c0_7, %c0_8, %c0_9, %c0_10] : memref<1x4x1x16xf32, #tpu.memory_space<vmem>>, vector<1x4x1x16xf32>
    %14 = vector.shape_cast %13 : vector<1x4x1x16xf32> to vector<4x1x16xf32>
    %15 = vector.broadcast %14 : vector<4x1x16xf32> to vector<4x8x16xf32>
    %16 = arith.addf %12, %15 : vector<4x8x16xf32>
    %c0_11 = arith.constant 0 : index
    %c0_12 = arith.constant 0 : index
    %c0_13 = arith.constant 0 : index
    %c0_14 = arith.constant 0 : index
    %17 = vector.load %arg6[%c0_11, %c0_12, %c0_13, %c0_14] : memref<1x4x32x16xf32, #tpu.memory_space<vmem>>, vector<1x4x32x16xf32>
    %18 = vector.shape_cast %17 : vector<1x4x32x16xf32> to vector<4x32x16xf32>
    %19 = arith.truncf %18 : vector<4x32x16xf32> to vector<4x32x16xbf16>
    "tpu.trace_start"() <{level = 10 : i32, message = "hnd,hdk->hnk"}> : () -> ()
    %cst_15 = arith.constant dense<0.000000e+00> : vector<4x8x16xf32>
    %20 = tpu.matmul %8, %19, %cst_15 {dimension_numbers = #tpu.dot_dimension_numbers<[2], [1], [1], [2], [0, 0, 0, 1, 1, 2], [0], [0]>} : vector<4x8x32xbf16>, vector<4x32x16xbf16>, vector<4x8x16xf32> -> vector<4x8x16xf32>
    "tpu.trace_stop"() : () -> ()
    %c0_16 = arith.constant 0 : index
    %c0_17 = arith.constant 0 : index
    %c0_18 = arith.constant 0 : index
    %c0_19 = arith.constant 0 : index
    %21 = vector.load %arg7[%c0_16, %c0_17, %c0_18, %c0_19] : memref<1x4x1x16xf32, #tpu.memory_space<vmem>>, vector<1x4x1x16xf32>
    %22 = vector.shape_cast %21 : vector<1x4x1x16xf32> to vector<4x1x16xf32>
    %23 = vector.broadcast %22 : vector<4x1x16xf32> to vector<4x8x16xf32>
    %24 = arith.addf %20, %23 : vector<4x8x16xf32>
    %c0_20 = arith.constant 0 : index
    %c0_21 = arith.constant 0 : index
    %c0_22 = arith.constant 0 : index
    %c0_23 = arith.constant 0 : index
    %25 = vector.load %arg8[%c0_20, %c0_21, %c0_22, %c0_23] : memref<1x4x32x16xf32, #tpu.memory_space<vmem>>, vector<1x4x32x16xf32>
    %26 = vector.shape_cast %25 : vector<1x4x32x16xf32> to vector<4x32x16xf32>
    %27 = arith.truncf %26 : vector<4x32x16xf32> to vector<4x32x16xbf16>
    "tpu.trace_start"() <{level = 10 : i32, message = "hnd,hdk->hnk"}> : () -> ()
    %cst_24 = arith.constant dense<0.000000e+00> : vector<4x8x16xf32>
    %28 = tpu.matmul %8, %27, %cst_24 {dimension_numbers = #tpu.dot_dimension_numbers<[2], [1], [1], [2], [0, 0, 0, 1, 1, 2], [0], [0]>} : vector<4x8x32xbf16>, vector<4x32x16xbf16>, vector<4x8x16xf32> -> vector<4x8x16xf32>
    "tpu.trace_stop"() : () -> ()
    %c0_25 = arith.constant 0 : index
    %c0_26 = arith.constant 0 : index
    %c0_27 = arith.constant 0 : index
    %c0_28 = arith.constant 0 : index
    %29 = vector.load %arg9[%c0_25, %c0_26, %c0_27, %c0_28] : memref<1x4x1x16xf32, #tpu.memory_space<vmem>>, vector<1x4x1x16xf32>
    %30 = vector.shape_cast %29 : vector<1x4x1x16xf32> to vector<4x1x16xf32>
    %31 = vector.broadcast %30 : vector<4x1x16xf32> to vector<4x8x16xf32>
    %32 = arith.addf %28, %31 : vector<4x8x16xf32>
    %33 = arith.truncf %16 : vector<4x8x16xf32> to vector<4x8x16xbf16>
    %34 = arith.truncf %24 : vector<4x8x16xf32> to vector<4x8x16xbf16>
    "tpu.trace_start"() <{level = 10 : i32, message = "hqd,hkd->hqk"}> : () -> ()
    %cst_29 = arith.constant dense<0.000000e+00> : vector<4x8x8xf32>
    %35 = tpu.matmul %33, %34, %cst_29 {dimension_numbers = #tpu.dot_dimension_numbers<[2], [2], [1], [1], [0, 0, 0, 1, 1, 1], [0], [0]>} : vector<4x8x16xbf16>, vector<4x8x16xbf16>, vector<4x8x8xf32> -> vector<4x8x8xf32>
    "tpu.trace_stop"() : () -> ()
    %c0_30 = arith.constant 0 : index
    %c0_31 = arith.constant 0 : index
    %c0_32 = arith.constant 0 : index
    %36 = vector.load %arg3[%c0_30, %c0_31, %c0_32] : memref<1x1x8xf32, #tpu.memory_space<vmem>>, vector<1x1x8xf32>
    %37 = vector.shape_cast %36 : vector<1x1x8xf32> to vector<1x8xf32>
    %38 = vector.shape_cast %37 : vector<1x8xf32> to vector<1x1x8xf32>
    %39 = vector.broadcast %38 : vector<1x1x8xf32> to vector<4x8x8xf32>
    %40 = arith.addf %35, %39 : vector<4x8x8xf32>
    %cst_33 = arith.constant dense<0xFF800000> : vector<4x8xf32>
    %41 = vector.multi_reduction <maximumf>, %40, %cst_33 [2] : vector<4x8x8xf32> to vector<4x8xf32>
    %42 = vector.shape_cast %41 : vector<4x8xf32> to vector<4x8x1xf32>
    %43 = vector.broadcast %42 : vector<4x8x1xf32> to vector<4x8x8xf32>
    %44 = arith.subf %40, %43 : vector<4x8x8xf32>
    %45 = math.exp %44 : vector<4x8x8xf32>
    %cst_34 = arith.constant dense<0.000000e+00> : vector<4x8xf32>
    %46 = vector.multi_reduction <add>, %45, %cst_34 [2] : vector<4x8x8xf32> to vector<4x8xf32>
    %47 = vector.shape_cast %46 : vector<4x8xf32> to vector<4x8x1xf32>
    %48 = vector.broadcast %47 : vector<4x8x1xf32> to vector<4x8x8xf32>
    %49 = arith.divf %45, %48 : vector<4x8x8xf32>
    %c0_35 = arith.constant 0 : index
    %c0_36 = arith.constant 0 : index
    %c0_37 = arith.constant 0 : index
    %c0_38 = arith.constant 0 : index
    %c0_39 = arith.constant 0 : index
    %50 = vector.load %arg21[%c0_35, %c0_36, %c0_37, %c0_38, %c0_39] : memref<1x1x4x8x8xf32, #tpu.memory_space<vmem>>, vector<1x1x4x8x8xf32>
    %51 = vector.shape_cast %50 : vector<1x1x4x8x8xf32> to vector<4x8x8xf32>
    %52 = vector.shape_cast %49 : vector<4x8x8xf32> to vector<1x1x4x8x8xf32>
    tpu.vector_store %arg21[%c0_35, %c0_36, %c0_37, %c0_38, %c0_39], %52 {strides = array<i32>} : memref<1x1x4x8x8xf32, #tpu.memory_space<vmem>>, vector<1x1x4x8x8xf32>,
    %53 = arith.truncf %49 : vector<4x8x8xf32> to vector<4x8x8xbf16>
    %54 = arith.truncf %32 : vector<4x8x16xf32> to vector<4x8x16xbf16>
    "tpu.trace_start"() <{level = 10 : i32, message = "hqk,hkd->hqd"}> : () -> ()
    %cst_40 = arith.constant dense<0.000000e+00> : vector<4x8x16xf32>
    %55 = tpu.matmul %53, %54, %cst_40 {dimension_numbers = #tpu.dot_dimension_numbers<[2], [1], [1], [2], [0, 0, 0, 1, 1, 2], [0], [0]>} : vector<4x8x8xbf16>, vector<4x8x16xbf16>, vector<4x8x16xf32> -> vector<4x8x16xf32>
    "tpu.trace_stop"() : () -> ()
    %56 = arith.truncf %55 : vector<4x8x16xf32> to vector<4x8x16xbf16>
    %c0_41 = arith.constant 0 : index
    %c0_42 = arith.constant 0 : index
    %c0_43 = arith.constant 0 : index
    %c0_44 = arith.constant 0 : index
    %57 = vector.load %arg10[%c0_41, %c0_42, %c0_43, %c0_44] : memref<1x4x16x32xf32, #tpu.memory_space<vmem>>, vector<1x4x16x32xf32>
    %58 = vector.shape_cast %57 : vector<1x4x16x32xf32> to vector<4x16x32xf32>
    %59 = arith.truncf %58 : vector<4x16x32xf32> to vector<4x16x32xbf16>
    "tpu.trace_start"() <{level = 10 : i32, message = "hnd,hde->hne"}> : () -> ()
    %cst_45 = arith.constant dense<0.000000e+00> : vector<4x8x32xf32>
    %60 = tpu.matmul %56, %59, %cst_45 {dimension_numbers = #tpu.dot_dimension_numbers<[2], [1], [1], [2], [0, 0, 0, 1, 1, 2], [0], [0]>} : vector<4x8x16xbf16>, vector<4x16x32xbf16>, vector<4x8x32xf32> -> vector<4x8x32xf32>
    "tpu.trace_stop"() : () -> ()
    %cst_46 = arith.constant dense<0.000000e+00> : vector<8x32xf32>
    %61 = vector.multi_reduction <add>, %60, %cst_46 [0] : vector<4x8x32xf32> to vector<8x32xf32>
    %c0_47 = arith.constant 0 : index
    %c0_48 = arith.constant 0 : index
    %c0_49 = arith.constant 0 : index
    %62 = vector.load %arg11[%c0_47, %c0_48, %c0_49] : memref<1x1x32xf32, #tpu.memory_space<vmem>>, vector<1x1x32xf32>
    %63 = vector.shape_cast %62 : vector<1x1x32xf32> to vector<1x32xf32>
    %64 = vector.broadcast %63 : vector<1x32xf32> to vector<8x32xf32>
    %65 = arith.addf %61, %64 : vector<8x32xf32>
    %66 = arith.addf %65, %4 : vector<8x32xf32>
    %c0_50 = arith.constant 0 : index
    %c0_51 = arith.constant 0 : index
    %c0_52 = arith.constant 0 : index
    %67 = vector.load %arg12[%c0_50, %c0_51, %c0_52] : memref<1x1x32xf32, #tpu.memory_space<vmem>>, vector<1x1x32xf32>
    %68 = vector.shape_cast %67 : vector<1x1x32xf32> to vector<1x32xf32>
    %c0_53 = arith.constant 0 : index
    %c0_54 = arith.constant 0 : index
    %c0_55 = arith.constant 0 : index
    %69 = vector.load %arg13[%c0_53, %c0_54, %c0_55] : memref<1x1x32xf32, #tpu.memory_space<vmem>>, vector<1x1x32xf32>
    %70 = vector.shape_cast %69 : vector<1x1x32xf32> to vector<1x32xf32>
    %cst_56 = arith.constant dense<0.000000e+00> : vector<8xf32>
    %71 = vector.multi_reduction <add>, %66, %cst_56 [1] : vector<8x32xf32> to vector<8xf32>
    %72 = vector.shape_cast %71 : vector<8xf32> to vector<8x1xf32>
    %cst_57 = arith.constant 3.200000e+01 : f32
    %73 = vector.broadcast %cst_57 : f32 to vector<8x1xf32>
    %74 = arith.divf %72, %73 : vector<8x1xf32>
    %75 = arith.mulf %66, %66 : vector<8x32xf32>
    %cst_58 = arith.constant dense<0.000000e+00> : vector<8xf32>
    %76 = vector.multi_reduction <add>, %75, %cst_58 [1] : vector<8x32xf32> to vector<8xf32>
    %77 = vector.shape_cast %76 : vector<8xf32> to vector<8x1xf32>
    %cst_59 = arith.constant 3.200000e+01 : f32
    %78 = vector.broadcast %cst_59 : f32 to vector<8x1xf32>
    %79 = arith.divf %77, %78 : vector<8x1xf32>
    %80 = vector.broadcast %74 : vector<8x1xf32> to vector<8x32xf32>
    %81 = arith.subf %66, %80 : vector<8x32xf32>
    %82 = arith.mulf %74, %74 : vector<8x1xf32>
    %83 = arith.subf %79, %82 : vector<8x1xf32>
    %cst_60 = arith.constant 9.99999974E-6 : f32
    %84 = vector.broadcast %cst_60 : f32 to vector<8x1xf32>
    %85 = arith.addf %83, %84 : vector<8x1xf32>
    %86 = math.rsqrt %85 : vector<8x1xf32>
    %87 = vector.broadcast %86 : vector<8x1xf32> to vector<8x32xf32>
    %88 = arith.mulf %81, %87 : vector<8x32xf32>
    %89 = vector.broadcast %68 : vector<1x32xf32> to vector<8x32xf32>
    %90 = arith.mulf %88, %89 : vector<8x32xf32>
    %91 = vector.broadcast %70 : vector<1x32xf32> to vector<8x32xf32>
    %92 = arith.addf %90, %91 : vector<8x32xf32>
    %93 = arith.truncf %92 : vector<8x32xf32> to vector<8x32xbf16>
    %c0_61 = arith.constant 0 : index
    %c0_62 = arith.constant 0 : index
    %c0_63 = arith.constant 0 : index
    %94 = vector.load %arg14[%c0_61, %c0_62, %c0_63] : memref<1x32x64xf32, #tpu.memory_space<vmem>>, vector<1x32x64xf32>
    %95 = vector.shape_cast %94 : vector<1x32x64xf32> to vector<32x64xf32>
    %96 = arith.truncf %95 : vector<32x64xf32> to vector<32x64xbf16>
    %cst_64 = arith.constant dense<0.000000e+00> : vector<8x64xf32>
    %97 = tpu.matmul %93, %96, %cst_64 {dimension_numbers = #tpu.dot_dimension_numbers<[1], [0], [0], [1], [0, 0, 1, 1], [], []>} : vector<8x32xbf16>, vector<32x64xbf16>, vector<8x64xf32> -> vector<8x64xf32>
    %c0_65 = arith.constant 0 : index
    %c0_66 = arith.constant 0 : index
    %c0_67 = arith.constant 0 : index
    %98 = vector.load %arg15[%c0_65, %c0_66, %c0_67] : memref<1x1x64xf32, #tpu.memory_space<vmem>>, vector<1x1x64xf32>
    %99 = vector.shape_cast %98 : vector<1x1x64xf32> to vector<1x64xf32>
    %100 = vector.broadcast %99 : vector<1x64xf32> to vector<8x64xf32>
    %101 = arith.addf %97, %100 : vector<8x64xf32>
    %cst_68 = arith.constant 0.000000e+00 : f32
    %102 = vector.broadcast %cst_68 : f32 to vector<8x64xf32>
    %103 = arith.maximumf %101, %102 : vector<8x64xf32>
    %104 = arith.truncf %103 : vector<8x64xf32> to vector<8x64xbf16>
    %c0_69 = arith.constant 0 : index
    %c0_70 = arith.constant 0 : index
    %c0_71 = arith.constant 0 : index
    %105 = vector.load %arg16[%c0_69, %c0_70, %c0_71] : memref<1x64x32xf32, #tpu.memory_space<vmem>>, vector<1x64x32xf32>
    %106 = vector.shape_cast %105 : vector<1x64x32xf32> to vector<64x32xf32>
    %107 = arith.truncf %106 : vector<64x32xf32> to vector<64x32xbf16>
    %cst_72 = arith.constant dense<0.000000e+00> : vector<8x32xf32>
    %108 = tpu.matmul %104, %107, %cst_72 {dimension_numbers = #tpu.dot_dimension_numbers<[1], [0], [0], [1], [0, 0, 1, 1], [], []>} : vector<8x64xbf16>, vector<64x32xbf16>, vector<8x32xf32> -> vector<8x32xf32>
    %c0_73 = arith.constant 0 : index
    %c0_74 = arith.constant 0 : index
    %c0_75 = arith.constant 0 : index
    %109 = vector.load %arg17[%c0_73, %c0_74, %c0_75] : memref<1x1x32xf32, #tpu.memory_space<vmem>>, vector<1x1x32xf32>
    %110 = vector.shape_cast %109 : vector<1x1x32xf32> to vector<1x32xf32>
    %111 = vector.broadcast %110 : vector<1x32xf32> to vector<8x32xf32>
    %112 = arith.addf %108, %111 : vector<8x32xf32>
    %113 = arith.addf %112, %92 : vector<8x32xf32>
    %c0_76 = arith.constant 0 : index
    %c0_77 = arith.constant 0 : index
    %c0_78 = arith.constant 0 : index
    %114 = vector.load %arg18[%c0_76, %c0_77, %c0_78] : memref<1x1x32xf32, #tpu.memory_space<vmem>>, vector<1x1x32xf32>
    %115 = vector.shape_cast %114 : vector<1x1x32xf32> to vector<1x32xf32>
    %c0_79 = arith.constant 0 : index
    %c0_80 = arith.constant 0 : index
    %c0_81 = arith.constant 0 : index
    %116 = vector.load %arg19[%c0_79, %c0_80, %c0_81] : memref<1x1x32xf32, #tpu.memory_space<vmem>>, vector<1x1x32xf32>
    %117 = vector.shape_cast %116 : vector<1x1x32xf32> to vector<1x32xf32>
    %cst_82 = arith.constant dense<0.000000e+00> : vector<8xf32>
    %118 = vector.multi_reduction <add>, %113, %cst_82 [1] : vector<8x32xf32> to vector<8xf32>
    %119 = vector.shape_cast %118 : vector<8xf32> to vector<8x1xf32>
    %cst_83 = arith.constant 3.200000e+01 : f32
    %120 = vector.broadcast %cst_83 : f32 to vector<8x1xf32>
    %121 = arith.divf %119, %120 : vector<8x1xf32>
    %122 = arith.mulf %113, %113 : vector<8x32xf32>
    %cst_84 = arith.constant dense<0.000000e+00> : vector<8xf32>
    %123 = vector.multi_reduction <add>, %122, %cst_84 [1] : vector<8x32xf32> to vector<8xf32>
    %124 = vector.shape_cast %123 : vector<8xf32> to vector<8x1xf32>
    %cst_85 = arith.constant 3.200000e+01 : f32
    %125 = vector.broadcast %cst_85 : f32 to vector<8x1xf32>
    %126 = arith.divf %124, %125 : vector<8x1xf32>
    %127 = vector.broadcast %121 : vector<8x1xf32> to vector<8x32xf32>
    %128 = arith.subf %113, %127 : vector<8x32xf32>
    %129 = arith.mulf %121, %121 : vector<8x1xf32>
    %130 = arith.subf %126, %129 : vector<8x1xf32>
    %cst_86 = arith.constant 9.99999974E-6 : f32
    %131 = vector.broadcast %cst_86 : f32 to vector<8x1xf32>
    %132 = arith.addf %130, %131 : vector<8x1xf32>
    %133 = math.rsqrt %132 : vector<8x1xf32>
    %134 = vector.broadcast %133 : vector<8x1xf32> to vector<8x32xf32>
    %135 = arith.mulf %128, %134 : vector<8x32xf32>
    %136 = vector.broadcast %115 : vector<1x32xf32> to vector<8x32xf32>
    %137 = arith.mulf %135, %136 : vector<8x32xf32>
    %138 = vector.broadcast %117 : vector<1x32xf32> to vector<8x32xf32>
    %139 = arith.addf %137, %138 : vector<8x32xf32>
    %c0_87 = arith.constant 0 : index
    %c0_88 = arith.constant 0 : index
    %c0_89 = arith.constant 0 : index
    %140 = vector.load %arg20[%c0_87, %c0_88, %c0_89] : memref<1x8x32xf32, #tpu.memory_space<vmem>>, vector<1x8x32xf32>
    %141 = vector.shape_cast %140 : vector<1x8x32xf32> to vector<8x32xf32>
    %142 = vector.shape_cast %139 : vector<8x32xf32> to vector<1x8x32xf32>
    tpu.vector_store %arg20[%c0_87, %c0_88, %c0_89], %142 {strides = array<i32>} : memref<1x8x32xf32, #tpu.memory_space<vmem>>, vector<1x8x32xf32>,
    return
  }
  func.func @transform_0(%arg0: i32, %arg1: i32) -> (i32, i32, i32) {
    %c0_i32 = arith.constant 0 : i32
    %c0_i32_0 = arith.constant 0 : i32
    %c0_i32_1 = arith.constant 0 : i32
    return %arg0, %c0_i32, %c0_i32_0 : i32, i32, i32
  }
  func.func @transform_1(%arg0: i32, %arg1: i32) -> (i32, i32, i32) {
    %c0_i32 = arith.constant 0 : i32
    %c0_i32_0 = arith.constant 0 : i32
    %c0_i32_1 = arith.constant 0 : i32
    return %arg0, %c0_i32, %c0_i32_0 : i32, i32, i32
  }
  func.func @transform_2(%arg0: i32, %arg1: i32) -> (i32, i32, i32, i32) {
    %c0_i32 = arith.constant 0 : i32
    %c0_i32_0 = arith.constant 0 : i32
    %c0_i32_1 = arith.constant 0 : i32
    %c0_i32_2 = arith.constant 0 : i32
    return %arg1, %c0_i32, %c0_i32_0, %c0_i32_1 : i32, i32, i32, i32
  }
  func.func @transform_3(%arg0: i32, %arg1: i32) -> (i32, i32, i32, i32) {
    %c0_i32 = arith.constant 0 : i32
    %c0_i32_0 = arith.constant 0 : i32
    %c0_i32_1 = arith.constant 0 : i32
    %c0_i32_2 = arith.constant 0 : i32
    return %arg1, %c0_i32, %c0_i32_0, %c0_i32_1 : i32, i32, i32, i32
  }
  func.func @transform_4(%arg0: i32, %arg1: i32) -> (i32, i32, i32, i32) {
    %c0_i32 = arith.constant 0 : i32
    %c0_i32_0 = arith.constant 0 : i32
    %c0_i32_1 = arith.constant 0 : i32
    %c0_i32_2 = arith.constant 0 : i32
    return %arg1, %c0_i32, %c0_i32_0, %c0_i32_1 : i32, i32, i32, i32
  }
  func.func @transform_5(%arg0: i32, %arg1: i32) -> (i32, i32, i32, i32) {
    %c0_i32 = arith.constant 0 : i32
    %c0_i32_0 = arith.constant 0 : i32
    %c0_i32_1 = arith.constant 0 : i32
    %c0_i32_2 = arith.constant 0 : i32
    return %arg1, %c0_i32, %c0_i32_0, %c0_i32_1 : i32, i32, i32, i32
  }
  func.func @transform_6(%arg0: i32, %arg1: i32) -> (i32, i32, i32, i32) {
    %c0_i32 = arith.constant 0 : i32
    %c0_i32_0 = arith.constant 0 : i32
    %c0_i32_1 = arith.constant 0 : i32
    %c0_i32_2 = arith.constant 0 : i32
    return %arg1, %c0_i32, %c0_i32_0, %c0_i32_1 : i32, i32, i32, i32
  }
  func.func @transform_7(%arg0: i32, %arg1: i32) -> (i32, i32, i32, i32) {
    %c0_i32 = arith.constant 0 : i32
    %c0_i32_0 = arith.constant 0 : i32
    %c0_i32_1 = arith.constant 0 : i32
    %c0_i32_2 = arith.constant 0 : i32
    return %arg1, %c0_i32, %c0_i32_0, %c0_i32_1 : i32, i32, i32, i32
  }
  func.func @transform_8(%arg0: i32, %arg1: i32) -> (i32, i32, i32, i32) {
    %c0_i32 = arith.constant 0 : i32
    %c0_i32_0 = arith.constant 0 : i32
    %c0_i32_1 = arith.constant 0 : i32
    %c0_i32_2 = arith.constant 0 : i32
    return %arg1, %c0_i32, %c0_i32_0, %c0_i32_1 : i32, i32, i32, i32
  }
  func.func @transform_9(%arg0: i32, %arg1: i32) -> (i32, i32, i32) {
    %c0_i32 = arith.constant 0 : i32
    %c0_i32_0 = arith.constant 0 : i32
    %c0_i32_1 = arith.constant 0 : i32
    return %arg1, %c0_i32, %c0_i32_0 : i32, i32, i32
  }
  func.func @transform_10(%arg0: i32, %arg1: i32) -> (i32, i32, i32) {
    %c0_i32 = arith.constant 0 : i32
    %c0_i32_0 = arith.constant 0 : i32
    %c0_i32_1 = arith.constant 0 : i32
    return %arg1, %c0_i32, %c0_i32_0 : i32, i32, i32
  }
  func.func @transform_11(%arg0: i32, %arg1: i32) -> (i32, i32, i32) {
    %c0_i32 = arith.constant 0 : i32
    %c0_i32_0 = arith.constant 0 : i32
    %c0_i32_1 = arith.constant 0 : i32
    return %arg1, %c0_i32, %c0_i32_0 : i32, i32, i32
  }
  func.func @transform_12(%arg0: i32, %arg1: i32) -> (i32, i32, i32) {
    %c0_i32 = arith.constant 0 : i32
    %c0_i32_0 = arith.constant 0 : i32
    %c0_i32_1 = arith.constant 0 : i32
    return %arg1, %c0_i32, %c0_i32_0 : i32, i32, i32
  }
  func.func @transform_13(%arg0: i32, %arg1: i32) -> (i32, i32, i32) {
    %c0_i32 = arith.constant 0 : i32
    %c0_i32_0 = arith.constant 0 : i32
    %c0_i32_1 = arith.constant 0 : i32
    return %arg1, %c0_i32, %c0_i32_0 : i32, i32, i32
  }
  func.func @transform_14(%arg0: i32, %arg1: i32) -> (i32, i32, i32) {
    %c0_i32 = arith.constant 0 : i32
    %c0_i32_0 = arith.constant 0 : i32
    %c0_i32_1 = arith.constant 0 : i32
    return %arg1, %c0_i32, %c0_i32_0 : i32, i32, i32
  }
  func.func @transform_15(%arg0: i32, %arg1: i32) -> (i32, i32, i32) {
    %c0_i32 = arith.constant 0 : i32
    %c0_i32_0 = arith.constant 0 : i32
    %c0_i32_1 = arith.constant 0 : i32
    return %arg1, %c0_i32, %c0_i32_0 : i32, i32, i32
  }
  func.func @transform_16(%arg0: i32, %arg1: i32) -> (i32, i32, i32) {
    %c0_i32 = arith.constant 0 : i32
    %c0_i32_0 = arith.constant 0 : i32
    %c0_i32_1 = arith.constant 0 : i32
    return %arg1, %c0_i32, %c0_i32_0 : i32, i32, i32
  }
  func.func @transform_17(%arg0: i32, %arg1: i32) -> (i32, i32, i32) {
    %c0_i32 = arith.constant 0 : i32
    %c0_i32_0 = arith.constant 0 : i32
    %c0_i32_1 = arith.constant 0 : i32
    return %arg1, %c0_i32, %c0_i32_0 : i32, i32, i32
  }
  func.func @transform_18(%arg0: i32, %arg1: i32) -> (i32, i32, i32) {
    %c0_i32 = arith.constant 0 : i32
    %c0_i32_0 = arith.constant 0 : i32
    %c0_i32_1 = arith.constant 0 : i32
    return %arg0, %c0_i32, %c0_i32_0 : i32, i32, i32
  }
  func.func @transform_19(%arg0: i32, %arg1: i32) -> (i32, i32, i32, i32, i32) {
    %c0_i32 = arith.constant 0 : i32
    %c0_i32_0 = arith.constant 0 : i32
    %c0_i32_1 = arith.constant 0 : i32
    %c0_i32_2 = arith.constant 0 : i32
    return %arg0, %arg1, %c0_i32, %c0_i32_0, %c0_i32_1 : i32, i32, i32, i32, i32
  }
}

</mosaic_0001>

<llo_original>
// kernel: encoder_forward.1
$region0: #{encoder_forward.1}
  #allocation0 [shape = 'u32[]', space=smem, size = 0x4, offset = 0x4, fixed_abs, tag = 'smem constant byte address 0x4 - core index']
  #allocation1 [shape = 'u32[144,128]{1,0:T(1,128)}', space=vmem, size = 0x12000, scoped, tag = 'internal scratch']
  %s0 = inlined_call_operand.vmem [shape: f32[2,8,32], index: 0, kind: input, shape index: {}]
  %s1 = inlined_call_operand.vmem [shape: f32[2,1,8], index: 1, kind: input, shape index: {}]
  %s2 = inlined_call_operand.vmem [shape: f32[2,4,32,16], index: 2, kind: input, shape index: {}]
  %s3 = inlined_call_operand.vmem [shape: f32[2,4,1,16], index: 3, kind: input, shape index: {}]
  %s4 = inlined_call_operand.vmem [shape: f32[2,4,32,16], index: 4, kind: input, shape index: {}]
  %s5 = inlined_call_operand.vmem [shape: f32[2,4,1,16], index: 5, kind: input, shape index: {}]
  %s6 = inlined_call_operand.vmem [shape: f32[2,4,32,16], index: 6, kind: input, shape index: {}]
  %s7 = inlined_call_operand.vmem [shape: f32[2,4,1,16], index: 7, kind: input, shape index: {}]
  %s8 = inlined_call_operand.vmem [shape: f32[2,4,16,32], index: 8, kind: input, shape index: {}]
  %s9 = inlined_call_operand.vmem [shape: f32[2,1,32], index: 9, kind: input, shape index: {}]
  %s10 = inlined_call_operand.vmem [shape: f32[2,1,32], index: 10, kind: input, shape index: {}]
  %s11 = inlined_call_operand.vmem [shape: f32[2,1,32], index: 11, kind: input, shape index: {}]
  %s12 = inlined_call_operand.vmem [shape: f32[2,32,64], index: 12, kind: input, shape index: {}]
  %s13 = inlined_call_operand.vmem [shape: f32[2,1,64], index: 13, kind: input, shape index: {}]
  %s14 = inlined_call_operand.vmem [shape: f32[2,64,32], index: 14, kind: input, shape index: {}]
  %s15 = inlined_call_operand.vmem [shape: f32[2,1,32], index: 15, kind: input, shape index: {}]
  %s16 = inlined_call_operand.vmem [shape: f32[2,1,32], index: 16, kind: input, shape index: {}]
  %s17 = inlined_call_operand.vmem [shape: f32[2,1,32], index: 17, kind: input, shape index: {}]
  %s18 = inlined_call_operand.hbm [shape: f32[2,8,32], index: 18, kind: output, shape index: {0}]
  %s19 = inlined_call_operand.vmem [shape: f32[2,2,4,8,8], index: 19, kind: output, shape index: {1}]
  %20 = xla_tuple %s18, %s19
  %s21 = sld [smem:[#allocation0]]
  $region117: #{encoder_forward.1} parent=0
    _
  %s23 = ssub.s32 1, %s21
  %s24 = scalar_select 0, %s23, %s21
  $region1: #{encoder_forward.1} parent=0
    #allocation2 [shape = 'u8[8192]{0}', space=vmem, size = 0x2000, scoped, tag = 'output window, operand 0']
    #allocation3 [shape = 's32[2]{0}', space=sflag, size = 0x8, scoped, tag = 'scoped memory for encoder_forward.1']
    %25 = vsyncpa [#allocation3], 0
    %s26 = scalar_lea.sflag [#allocation3], 1
    %27 = vsyncpa %s26, 0
    loop: start=0, step=1, limit=6
    $region2: #{encoder_forward.1} parent=1 // loop_pre_header
      _
    $region3: #{encoder_forward.1} parent=1 // loop_header
      %s29 = sphi 0, %s33
      %p30 = scmp.ge.s32.totalorder %s29, 6
      %s36 = sphi 0, %s48
      %s37 = sphi 0, %s44
      %s38 = sphi 0, %s36
      %s39 = sphi 0, %s37
      %s40 = sphi 0, %s38
      %s41 = sphi 0, %s39
      %s51 = sphi 0, %s53
      %s54 = sphi 0, %s51
      %s55 = sphi 0, %s54
      %s71 = sphi 0, %s55
      %s77 = sphi 0, %s79
      %s80 = sphi 0, %s77
      %s81 = sphi 0, %s80
      %s97 = sphi 0, %s81
      %s103 = sphi 0, %s105
      %s106 = sphi 0, %s103
      %s107 = sphi 0, %s106
      %s123 = sphi 0, %s107
      %s129 = sphi 0, %s131
      %s132 = sphi 0, %s129
      %s133 = sphi 0, %s132
      %s149 = sphi 0, %s133
      %s155 = sphi 0, %s157
      %s158 = sphi 0, %s155
      %s159 = sphi 0, %s158
      %s175 = sphi 0, %s159
      %s181 = sphi 0, %s183
      %s184 = sphi 0, %s181
      %s185 = sphi 0, %s184
      %s201 = sphi 0, %s185
      %s207 = sphi 0, %s209
      %s210 = sphi 0, %s207
      %s211 = sphi 0, %s210
      %s227 = sphi 0, %s211
      %s233 = sphi 0, %s235
      %s236 = sphi 0, %s233
      %s237 = sphi 0, %s236
      %s253 = sphi 0, %s237
      %s259 = sphi 0, %s261
      %s262 = sphi 0, %s259
      %s263 = sphi 0, %s262
      %s279 = sphi 0, %s263
      %s285 = sphi 0, %s287
      %s288 = sphi 0, %s285
      %s289 = sphi 0, %s288
      %s305 = sphi 0, %s289
      %s311 = sphi 0, %s313
      %s314 = sphi 0, %s311
      %s315 = sphi 0, %s314
      %s331 = sphi 0, %s315
      %s337 = sphi 0, %s339
      %s340 = sphi 0, %s337
      %s341 = sphi 0, %s340
      %s357 = sphi 0, %s341
      %s363 = sphi 0, %s365
      %s366 = sphi 0, %s363
      %s367 = sphi 0, %s366
      %s383 = sphi 0, %s367
      %s389 = sphi 0, %s391
      %s392 = sphi 0, %s389
      %s393 = sphi 0, %s392
      %s409 = sphi 0, %s393
      %s415 = sphi 0, %s417
      %s418 = sphi 0, %s415
      %s419 = sphi 0, %s418
      %s435 = sphi 0, %s419
      %s441 = sphi 0, %s443
      %s444 = sphi 0, %s441
      %s445 = sphi 0, %s444
      %s461 = sphi 0, %s445
      %s467 = sphi 0, %s469
      %s470 = sphi 0, %s467
      %s471 = sphi 0, %s470
      %s487 = sphi 0, %s471
      %s493 = sphi 0, %s495
      %s496 = sphi 0, %s493
      %s497 = sphi 0, %s496
      %s513 = sphi 0, %s497
      %s519 = sphi 0, %s521
      %s522 = sphi 0, %s519
      %s523 = sphi 0, %s522
      %s539 = sphi 0, %s523
      %s547 = sphi 0, %s549
      %s550 = sphi 0, %s547
      %s551 = sphi 0, %s550
      %s567 = sphi 0, %s551
    $region4: #{encoder_forward.1} parent=1 // loop_header_branch
      %32 = sbr.rel (%p30) target = $region8
    $region5: #{encoder_forward.1} parent=1 // loop_body
      %s34 = ssub.s32 %s29, 1
      %s35 = ssub.s32 %s29, 2
      %s42 = sadd.s32 1, %s37
      %p43 = scmp.ge.s32.totalorder %s42, 2
      %s44 = scalar_select %p43, 0, %s42
      %s45 = sadd.s32 1, %s36
      %s46 = scalar_select %p43, %s45, %s36
      %p47 = scmp.ge.s32.totalorder %s46, 2
      %s48 = scalar_select %p47, 0, %s46
      %s49 = ssub.s32 %s36, %s48
      %p50 = scmp.eq.s32.totalorder %s49, 0
      %s52 = sadd.s32 %s51, 1
      %s53 = scalar_select %p50, %s51, %s52
      %p56 = pneg %p50
      %p57 = scmp.eq.s32.totalorder %s29, 3
      %p58 = por %p56, %p57
      %p59 = scmp.ne.s32.totalorder %s51, %s54
      %p60 = scmp.eq.s32.totalorder %s29, 0
      %p61 = por %p59, %p60
      %p62 = scmp.ne.s32.totalorder %s51, %s54
      %p63 = scmp.eq.s32.totalorder %s34, 3
      %p64 = por %p62, %p63
      %p65 = scmp.ne.s32.totalorder %s54, %s55
      %p66 = scmp.eq.s32.totalorder %s34, 0
      %p67 = por %p65, %p66
      %p68 = scmp.ne.s32.totalorder %s54, %s55
      %p69 = scmp.eq.s32.totalorder %s35, 3
      %p70 = por %p68, %p69
      %p72 = scmp.ne.s32.totalorder %s55, %s71
      %p73 = scmp.eq.s32.totalorder %s35, 0
      %p74 = por %p72, %p73
      %s75 = ssub.s32 %s36, %s48
      %p76 = scmp.eq.s32.totalorder %s75, 0
      %s78 = sadd.s32 %s77, 1
      %s79 = scalar_select %p76, %s77, %s78
      %p82 = pneg %p76
      %p83 = scmp.eq.s32.totalorder %s29, 3
      %p84 = por %p82, %p83
      %p85 = scmp.ne.s32.totalorder %s77, %s80
      %p86 = scmp.eq.s32.totalorder %s29, 0
      %p87 = por %p85, %p86
      %p88 = scmp.ne.s32.totalorder %s77, %s80
      %p89 = scmp.eq.s32.totalorder %s34, 3
      %p90 = por %p88, %p89
      %p91 = scmp.ne.s32.totalorder %s80, %s81
      %p92 = scmp.eq.s32.totalorder %s34, 0
      %p93 = por %p91, %p92
      %p94 = scmp.ne.s32.totalorder %s80, %s81
      %p95 = scmp.eq.s32.totalorder %s35, 3
      %p96 = por %p94, %p95
      %p98 = scmp.ne.s32.totalorder %s81, %s97
      %p99 = scmp.eq.s32.totalorder %s35, 0
      %p100 = por %p98, %p99
      %s101 = ssub.s32 %s37, %s44
      %p102 = scmp.eq.s32.totalorder %s101, 0
      %s104 = sadd.s32 %s103, 1
      %s105 = scalar_select %p102, %s103, %s104
      %p108 = pneg %p102
      %p109 = scmp.eq.s32.totalorder %s29, 3
      %p110 = por %p108, %p109
      %p111 = scmp.ne.s32.totalorder %s103, %s106
      %p112 = scmp.eq.s32.totalorder %s29, 0
      %p113 = por %p111, %p112
      %p114 = scmp.ne.s32.totalorder %s103, %s106
      %p115 = scmp.eq.s32.totalorder %s34, 3
      %p116 = por %p114, %p115
      %p117 = scmp.ne.s32.totalorder %s106, %s107
      %p118 = scmp.eq.s32.totalorder %s34, 0
      %p119 = por %p117, %p118
      %p120 = scmp.ne.s32.totalorder %s106, %s107
      %p121 = scmp.eq.s32.totalorder %s35, 3
      %p122 = por %p120, %p121
      %p124 = scmp.ne.s32.totalorder %s107, %s123
      %p125 = scmp.eq.s32.totalorder %s35, 0
      %p126 = por %p124, %p125
      %s127 = ssub.s32 %s37, %s44
      %p128 = scmp.eq.s32.totalorder %s127, 0
      %s130 = sadd.s32 %s129, 1
      %s131 = scalar_select %p128, %s129, %s130
      %p134 = pneg %p128
      %p135 = scmp.eq.s32.totalorder %s29, 3
      %p136 = por %p134, %p135
      %p137 = scmp.ne.s32.totalorder %s129, %s132
      %p138 = scmp.eq.s32.totalorder %s29, 0
      %p139 = por %p137, %p138
      %p140 = scmp.ne.s32.totalorder %s129, %s132
      %p141 = scmp.eq.s32.totalorder %s34, 3
      %p142 = por %p140, %p141
      %p143 = scmp.ne.s32.totalorder %s132, %s133
      %p144 = scmp.eq.s32.totalorder %s34, 0
      %p145 = por %p143, %p144
      %p146 = scmp.ne.s32.totalorder %s132, %s133
      %p147 = scmp.eq.s32.totalorder %s35, 3
      %p148 = por %p146, %p147
      %p150 = scmp.ne.s32.totalorder %s133, %s149
      %p151 = scmp.eq.s32.totalorder %s35, 0
      %p152 = por %p150, %p151
      %s153 = ssub.s32 %s37, %s44
      %p154 = scmp.eq.s32.totalorder %s153, 0
      %s156 = sadd.s32 %s155, 1
      %s157 = scalar_select %p154, %s155, %s156
      %p160 = pneg %p154
      %p161 = scmp.eq.s32.totalorder %s29, 3
      %p162 = por %p160, %p161
      %p163 = scmp.ne.s32.totalorder %s155, %s158
      %p164 = scmp.eq.s32.totalorder %s29, 0
      %p165 = por %p163, %p164
      %p166 = scmp.ne.s32.totalorder %s155, %s158
      %p167 = scmp.eq.s32.totalorder %s34, 3
      %p168 = por %p166, %p167
      %p169 = scmp.ne.s32.totalorder %s158, %s159
      %p170 = scmp.eq.s32.totalorder %s34, 0
      %p171 = por %p169, %p170
      %p172 = scmp.ne.s32.totalorder %s158, %s159
      %p173 = scmp.eq.s32.totalorder %s35, 3
      %p174 = por %p172, %p173
      %p176 = scmp.ne.s32.totalorder %s159, %s175
      %p177 = scmp.eq.s32.totalorder %s35, 0
      %p178 = por %p176, %p177
      %s179 = ssub.s32 %s37, %s44
      %p180 = scmp.eq.s32.totalorder %s179, 0
      %s182 = sadd.s32 %s181, 1
      %s183 = scalar_select %p180, %s181, %s182
      %p186 = pneg %p180
      %p187 = scmp.eq.s32.totalorder %s29, 3
      %p188 = por %p186, %p187
      %p189 = scmp.ne.s32.totalorder %s181, %s184
      %p190 = scmp.eq.s32.totalorder %s29, 0
      %p191 = por %p189, %p190
      %p192 = scmp.ne.s32.totalorder %s181, %s184
      %p193 = scmp.eq.s32.totalorder %s34, 3
      %p194 = por %p192, %p193
      %p195 = scmp.ne.s32.totalorder %s184, %s185
      %p196 = scmp.eq.s32.totalorder %s34, 0
      %p197 = por %p195, %p196
      %p198 = scmp.ne.s32.totalorder %s184, %s185
      %p199 = scmp.eq.s32.totalorder %s35, 3
      %p200 = por %p198, %p199
      %p202 = scmp.ne.s32.totalorder %s185, %s201
      %p203 = scmp.eq.s32.totalorder %s35, 0
      %p204 = por %p202, %p203
      %s205 = ssub.s32 %s37, %s44
      %p206 = scmp.eq.s32.totalorder %s205, 0
      %s208 = sadd.s32 %s207, 1
      %s209 = scalar_select %p206, %s207, %s208
      %p212 = pneg %p206
      %p213 = scmp.eq.s32.totalorder %s29, 3
      %p214 = por %p212, %p213
      %p215 = scmp.ne.s32.totalorder %s207, %s210
      %p216 = scmp.eq.s32.totalorder %s29, 0
      %p217 = por %p215, %p216
      %p218 = scmp.ne.s32.totalorder %s207, %s210
      %p219 = scmp.eq.s32.totalorder %s34, 3
      %p220 = por %p218, %p219
      %p221 = scmp.ne.s32.totalorder %s210, %s211
      %p222 = scmp.eq.s32.totalorder %s34, 0
      %p223 = por %p221, %p222
      %p224 = scmp.ne.s32.totalorder %s210, %s211
      %p225 = scmp.eq.s32.totalorder %s35, 3
      %p226 = por %p224, %p225
      %p228 = scmp.ne.s32.totalorder %s211, %s227
      %p229 = scmp.eq.s32.totalorder %s35, 0
      %p230 = por %p228, %p229
      %s231 = ssub.s32 %s37, %s44
      %p232 = scmp.eq.s32.totalorder %s231, 0
      %s234 = sadd.s32 %s233, 1
      %s235 = scalar_select %p232, %s233, %s234
      %p238 = pneg %p232
      %p239 = scmp.eq.s32.totalorder %s29, 3
      %p240 = por %p238, %p239
      %p241 = scmp.ne.s32.totalorder %s233, %s236
      %p242 = scmp.eq.s32.totalorder %s29, 0
      %p243 = por %p241, %p242
      %p244 = scmp.ne.s32.totalorder %s233, %s236
      %p245 = scmp.eq.s32.totalorder %s34, 3
      %p246 = por %p244, %p245
      %p247 = scmp.ne.s32.totalorder %s236, %s237
      %p248 = scmp.eq.s32.totalorder %s34, 0
      %p249 = por %p247, %p248
      %p250 = scmp.ne.s32.totalorder %s236, %s237
      %p251 = scmp.eq.s32.totalorder %s35, 3
      %p252 = por %p250, %p251
      %p254 = scmp.ne.s32.totalorder %s237, %s253
      %p255 = scmp.eq.s32.totalorder %s35, 0
      %p256 = por %p254, %p255
      %s257 = ssub.s32 %s37, %s44
      %p258 = scmp.eq.s32.totalorder %s257, 0
      %s260 = sadd.s32 %s259, 1
      %s261 = scalar_select %p258, %s259, %s260
      %p264 = pneg %p258
      %p265 = scmp.eq.s32.totalorder %s29, 3
      %p266 = por %p264, %p265
      %p267 = scmp.ne.s32.totalorder %s259, %s262
      %p268 = scmp.eq.s32.totalorder %s29, 0
      %p269 = por %p267, %p268
      %p270 = scmp.ne.s32.totalorder %s259, %s262
      %p271 = scmp.eq.s32.totalorder %s34, 3
      %p272 = por %p270, %p271
      %p273 = scmp.ne.s32.totalorder %s262, %s263
      %p274 = scmp.eq.s32.totalorder %s34, 0
      %p275 = por %p273, %p274
      %p276 = scmp.ne.s32.totalorder %s262, %s263
      %p277 = scmp.eq.s32.totalorder %s35, 3
      %p278 = por %p276, %p277
      %p280 = scmp.ne.s32.totalorder %s263, %s279
      %p281 = scmp.eq.s32.totalorder %s35, 0
      %p282 = por %p280, %p281
      %s283 = ssub.s32 %s37, %s44
      %p284 = scmp.eq.s32.totalorder %s283, 0
      %s286 = sadd.s32 %s285, 1
      %s287 = scalar_select %p284, %s285, %s286
      %p290 = pneg %p284
      %p291 = scmp.eq.s32.totalorder %s29, 3
      %p292 = por %p290, %p291
      %p293 = scmp.ne.s32.totalorder %s285, %s288
      %p294 = scmp.eq.s32.totalorder %s29, 0
      %p295 = por %p293, %p294
      %p296 = scmp.ne.s32.totalorder %s285, %s288
      %p297 = scmp.eq.s32.totalorder %s34, 3
      %p298 = por %p296, %p297
      %p299 = scmp.ne.s32.totalorder %s288, %s289
      %p300 = scmp.eq.s32.totalorder %s34, 0
      %p301 = por %p299, %p300
      %p302 = scmp.ne.s32.totalorder %s288, %s289
      %p303 = scmp.eq.s32.totalorder %s35, 3
      %p304 = por %p302, %p303
      %p306 = scmp.ne.s32.totalorder %s289, %s305
      %p307 = scmp.eq.s32.totalorder %s35, 0
      %p308 = por %p306, %p307
      %s309 = ssub.s32 %s37, %s44
      %p310 = scmp.eq.s32.totalorder %s309, 0
      %s312 = sadd.s32 %s311, 1
      %s313 = scalar_select %p310, %s311, %s312
      %p316 = pneg %p310
      %p317 = scmp.eq.s32.totalorder %s29, 3
      %p318 = por %p316, %p317
      %p319 = scmp.ne.s32.totalorder %s311, %s314
      %p320 = scmp.eq.s32.totalorder %s29, 0
      %p321 = por %p319, %p320
      %p322 = scmp.ne.s32.totalorder %s311, %s314
      %p323 = scmp.eq.s32.totalorder %s34, 3
      %p324 = por %p322, %p323
      %p325 = scmp.ne.s32.totalorder %s314, %s315
      %p326 = scmp.eq.s32.totalorder %s34, 0
      %p327 = por %p325, %p326
      %p328 = scmp.ne.s32.totalorder %s314, %s315
      %p329 = scmp.eq.s32.totalorder %s35, 3
      %p330 = por %p328, %p329
      %p332 = scmp.ne.s32.totalorder %s315, %s331
      %p333 = scmp.eq.s32.totalorder %s35, 0
      %p334 = por %p332, %p333
      %s335 = ssub.s32 %s37, %s44
      %p336 = scmp.eq.s32.totalorder %s335, 0
      %s338 = sadd.s32 %s337, 1
      %s339 = scalar_select %p336, %s337, %s338
      %p342 = pneg %p336
      %p343 = scmp.eq.s32.totalorder %s29, 3
      %p344 = por %p342, %p343
      %p345 = scmp.ne.s32.totalorder %s337, %s340
      %p346 = scmp.eq.s32.totalorder %s29, 0
      %p347 = por %p345, %p346
      %p348 = scmp.ne.s32.totalorder %s337, %s340
      %p349 = scmp.eq.s32.totalorder %s34, 3
      %p350 = por %p348, %p349
      %p351 = scmp.ne.s32.totalorder %s340, %s341
      %p352 = scmp.eq.s32.totalorder %s34, 0
      %p353 = por %p351, %p352
      %p354 = scmp.ne.s32.totalorder %s340, %s341
      %p355 = scmp.eq.s32.totalorder %s35, 3
      %p356 = por %p354, %p355
      %p358 = scmp.ne.s32.totalorder %s341, %s357
      %p359 = scmp.eq.s32.totalorder %s35, 0
      %p360 = por %p358, %p359
      %s361 = ssub.s32 %s37, %s44
      %p362 = scmp.eq.s32.totalorder %s361, 0
      %s364 = sadd.s32 %s363, 1
      %s365 = scalar_select %p362, %s363, %s364
      %p368 = pneg %p362
      %p369 = scmp.eq.s32.totalorder %s29, 3
      %p370 = por %p368, %p369
      %p371 = scmp.ne.s32.totalorder %s363, %s366
      %p372 = scmp.eq.s32.totalorder %s29, 0
      %p373 = por %p371, %p372
      %p374 = scmp.ne.s32.totalorder %s363, %s366
      %p375 = scmp.eq.s32.totalorder %s34, 3
      %p376 = por %p374, %p375
      %p377 = scmp.ne.s32.totalorder %s366, %s367
      %p378 = scmp.eq.s32.totalorder %s34, 0
      %p379 = por %p377, %p378
      %p380 = scmp.ne.s32.totalorder %s366, %s367
      %p381 = scmp.eq.s32.totalorder %s35, 3
      %p382 = por %p380, %p381
      %p384 = scmp.ne.s32.totalorder %s367, %s383
      %p385 = scmp.eq.s32.totalorder %s35, 0
      %p386 = por %p384, %p385
      %s387 = ssub.s32 %s37, %s44
      %p388 = scmp.eq.s32.totalorder %s387, 0
      %s390 = sadd.s32 %s389, 1
      %s391 = scalar_select %p388, %s389, %s390
      %p394 = pneg %p388
      %p395 = scmp.eq.s32.totalorder %s29, 3
      %p396 = por %p394, %p395
      %p397 = scmp.ne.s32.totalorder %s389, %s392
      %p398 = scmp.eq.s32.totalorder %s29, 0
      %p399 = por %p397, %p398
      %p400 = scmp.ne.s32.totalorder %s389, %s392
      %p401 = scmp.eq.s32.totalorder %s34, 3
      %p402 = por %p400, %p401
      %p403 = scmp.ne.s32.totalorder %s392, %s393
      %p404 = scmp.eq.s32.totalorder %s34, 0
      %p405 = por %p403, %p404
      %p406 = scmp.ne.s32.totalorder %s392, %s393
      %p407 = scmp.eq.s32.totalorder %s35, 3
      %p408 = por %p406, %p407
      %p410 = scmp.ne.s32.totalorder %s393, %s409
      %p411 = scmp.eq.s32.totalorder %s35, 0
      %p412 = por %p410, %p411
      %s413 = ssub.s32 %s37, %s44
      %p414 = scmp.eq.s32.totalorder %s413, 0
      %s416 = sadd.s32 %s415, 1
      %s417 = scalar_select %p414, %s415, %s416
      %p420 = pneg %p414
      %p421 = scmp.eq.s32.totalorder %s29, 3
      %p422 = por %p420, %p421
      %p423 = scmp.ne.s32.totalorder %s415, %s418
      %p424 = scmp.eq.s32.totalorder %s29, 0
      %p425 = por %p423, %p424
      %p426 = scmp.ne.s32.totalorder %s415, %s418
      %p427 = scmp.eq.s32.totalorder %s34, 3
      %p428 = por %p426, %p427
      %p429 = scmp.ne.s32.totalorder %s418, %s419
      %p430 = scmp.eq.s32.totalorder %s34, 0
      %p431 = por %p429, %p430
      %p432 = scmp.ne.s32.totalorder %s418, %s419
      %p433 = scmp.eq.s32.totalorder %s35, 3
      %p434 = por %p432, %p433
      %p436 = scmp.ne.s32.totalorder %s419, %s435
      %p437 = scmp.eq.s32.totalorder %s35, 0
      %p438 = por %p436, %p437
      %s439 = ssub.s32 %s37, %s44
      %p440 = scmp.eq.s32.totalorder %s439, 0
      %s442 = sadd.s32 %s441, 1
      %s443 = scalar_select %p440, %s441, %s442
      %p446 = pneg %p440
      %p447 = scmp.eq.s32.totalorder %s29, 3
      %p448 = por %p446, %p447
      %p449 = scmp.ne.s32.totalorder %s441, %s444
      %p450 = scmp.eq.s32.totalorder %s29, 0
      %p451 = por %p449, %p450
      %p452 = scmp.ne.s32.totalorder %s441, %s444
      %p453 = scmp.eq.s32.totalorder %s34, 3
      %p454 = por %p452, %p453
      %p455 = scmp.ne.s32.totalorder %s444, %s445
      %p456 = scmp.eq.s32.totalorder %s34, 0
      %p457 = por %p455, %p456
      %p458 = scmp.ne.s32.totalorder %s444, %s445
      %p459 = scmp.eq.s32.totalorder %s35, 3
      %p460 = por %p458, %p459
      %p462 = scmp.ne.s32.totalorder %s445, %s461
      %p463 = scmp.eq.s32.totalorder %s35, 0
      %p464 = por %p462, %p463
      %s465 = ssub.s32 %s37, %s44
      %p466 = scmp.eq.s32.totalorder %s465, 0
      %s468 = sadd.s32 %s467, 1
      %s469 = scalar_select %p466, %s467, %s468
      %p472 = pneg %p466
      %p473 = scmp.eq.s32.totalorder %s29, 3
      %p474 = por %p472, %p473
      %p475 = scmp.ne.s32.totalorder %s467, %s470
      %p476 = scmp.eq.s32.totalorder %s29, 0
      %p477 = por %p475, %p476
      %p478 = scmp.ne.s32.totalorder %s467, %s470
      %p479 = scmp.eq.s32.totalorder %s34, 3
      %p480 = por %p478, %p479
      %p481 = scmp.ne.s32.totalorder %s470, %s471
      %p482 = scmp.eq.s32.totalorder %s34, 0
      %p483 = por %p481, %p482
      %p484 = scmp.ne.s32.totalorder %s470, %s471
      %p485 = scmp.eq.s32.totalorder %s35, 3
      %p486 = por %p484, %p485
      %p488 = scmp.ne.s32.totalorder %s471, %s487
      %p489 = scmp.eq.s32.totalorder %s35, 0
      %p490 = por %p488, %p489
      %s491 = ssub.s32 %s37, %s44
      %p492 = scmp.eq.s32.totalorder %s491, 0
      %s494 = sadd.s32 %s493, 1
      %s495 = scalar_select %p492, %s493, %s494
      %p498 = pneg %p492
      %p499 = scmp.eq.s32.totalorder %s29, 3
      %p500 = por %p498, %p499
      %p501 = scmp.ne.s32.totalorder %s493, %s496
      %p502 = scmp.eq.s32.totalorder %s29, 0
      %p503 = por %p501, %p502
      %p504 = scmp.ne.s32.totalorder %s493, %s496
      %p505 = scmp.eq.s32.totalorder %s34, 3
      %p506 = por %p504, %p505
      %p507 = scmp.ne.s32.totalorder %s496, %s497
      %p508 = scmp.eq.s32.totalorder %s34, 0
      %p509 = por %p507, %p508
      %p510 = scmp.ne.s32.totalorder %s496, %s497
      %p511 = scmp.eq.s32.totalorder %s35, 3
      %p512 = por %p510, %p511
      %p514 = scmp.ne.s32.totalorder %s497, %s513
      %p515 = scmp.eq.s32.totalorder %s35, 0
      %p516 = por %p514, %p515
      %s517 = ssub.s32 %s36, %s48
      %p518 = scmp.eq.s32.totalorder %s517, 0
      %s520 = sadd.s32 %s519, 1
      %s521 = scalar_select %p518, %s519, %s520
      %p524 = pneg %p518
      %p525 = scmp.eq.s32.totalorder %s29, 3
      %p526 = por %p524, %p525
      %p527 = scmp.ne.s32.totalorder %s519, %s522
      %p528 = scmp.eq.s32.totalorder %s29, 0
      %p529 = por %p527, %p528
      %p530 = scmp.ne.s32.totalorder %s519, %s522
      %p531 = scmp.eq.s32.totalorder %s34, 3
      %p532 = por %p530, %p531
      %p533 = scmp.ne.s32.totalorder %s522, %s523
      %p534 = scmp.eq.s32.totalorder %s34, 0
      %p535 = por %p533, %p534
      %p536 = scmp.ne.s32.totalorder %s522, %s523
      %p537 = scmp.eq.s32.totalorder %s35, 3
      %p538 = por %p536, %p537
      %p540 = scmp.ne.s32.totalorder %s523, %s539
      %p541 = scmp.eq.s32.totalorder %s35, 0
      %p542 = por %p540, %p541
      %s543 = ssub.s32 %s36, %s48
      %s544 = ssub.s32 %s37, %s44
      %s545 = sor.u32 %s543, %s544
      %p546 = scmp.eq.s32.totalorder %s545, 0
      %s548 = sadd.s32 %s547, 1
      %s549 = scalar_select %p546, %s547, %s548
      %p552 = pneg %p546
      %p553 = scmp.eq.s32.totalorder %s29, 3
      %p554 = por %p552, %p553
      %p555 = scmp.ne.s32.totalorder %s547, %s550
      %p556 = scmp.eq.s32.totalorder %s29, 0
      %p557 = por %p555, %p556
      %p558 = scmp.ne.s32.totalorder %s547, %s550
      %p559 = scmp.eq.s32.totalorder %s34, 3
      %p560 = por %p558, %p559
      %p561 = scmp.ne.s32.totalorder %s550, %s551
      %p562 = scmp.eq.s32.totalorder %s34, 0
      %p563 = por %p561, %p562
      %p564 = scmp.ne.s32.totalorder %s550, %s551
      %p565 = scmp.eq.s32.totalorder %s35, 3
      %p566 = por %p564, %p565
      %p568 = scmp.ne.s32.totalorder %s551, %s567
      %p569 = scmp.eq.s32.totalorder %s35, 0
      %p570 = por %p568, %p569
      %p571 = scmp.le.s32.totalorder 1, %s29
      %p572 = scmp.lt.s32.totalorder %s29, 5
      %p573 = pnand %p571, %p572
      %p574 = pneg %p573
      // Predicated region
      $region9: #{encoder_forward.1} parent=5 // pred_check
        _
      $region10: #{encoder_forward.1} parent=5 // pred_check_branch
        %576 = sbr.rel (%p573) target = $region12
      $region11: #{encoder_forward.1} parent=5 // pred_region
        %s577 = ssub.s32 %s29, 1
      $region12: #{encoder_forward.1} parent=5 // pred_fallthru
        _
      %p578 = scmp.lt.s32.totalorder %s29, 4
      // Predicated region
      $region13: #{encoder_forward.1} parent=5 // pred_check
        %p579 = pneg %p578
      $region14: #{encoder_forward.1} parent=5 // pred_check_branch
        %581 = sbr.rel (%p579) target = $region16
      $region15: #{encoder_forward.1} parent=5 // pred_region
        // Predicated region
        $region17: #{encoder_forward.1} parent=15 // pred_check
          %p582 = pneg %p61
        $region18: #{encoder_forward.1} parent=15 // pred_check_branch
          %584 = sbr.rel (%p582) target = $region20
        $region19: #{encoder_forward.1} parent=15 // pred_region
          %p585 = scmp.lt.s32.totalorder %s36, 1
          %s586 = scalar_select %p585, %s36, 1
          %s587 = smul.addr %s586, 8
          %s588 = scalar_lea.vmem %s0, %s587
        $region20: #{encoder_forward.1} parent=15 // pred_fallthru
          _
        // Predicated region
        $region21: #{encoder_forward.1} parent=15 // pred_check
          %p589 = pneg %p87
        $region22: #{encoder_forward.1} parent=15 // pred_check_branch
          %591 = sbr.rel (%p589) target = $region24
        $region23: #{encoder_forward.1} parent=15 // pred_region
          %p592 = scmp.lt.s32.totalorder %s36, 1
          %s593 = scalar_select %p592, %s36, 1
          %s594 = scalar_lea.vmem %s1, %s593
        $region24: #{encoder_forward.1} parent=15 // pred_fallthru
          _
        // Predicated region
        $region25: #{encoder_forward.1} parent=15 // pred_check
          %p595 = pneg %p113
        $region26: #{encoder_forward.1} parent=15 // pred_check_branch
          %597 = sbr.rel (%p595) target = $region28
        $region27: #{encoder_forward.1} parent=15 // pred_region
          %p598 = scmp.lt.s32.totalorder %s37, 1
          %s599 = scalar_select %p598, %s37, 1
          %s600 = smul.addr %s599, 16
          %s601 = smul.addr %s600, 8
          %s602 = scalar_lea.vmem %s2, %s601
        $region28: #{encoder_forward.1} parent=15 // pred_fallthru
          _
        // Predicated region
        $region29: #{encoder_forward.1} parent=15 // pred_check
          %p603 = pneg %p139
        $region30: #{encoder_forward.1} parent=15 // pred_check_branch
          %605 = sbr.rel (%p603) target = $region32
        $region31: #{encoder_forward.1} parent=15 // pred_region
          %p606 = scmp.lt.s32.totalorder %s37, 1
          %s607 = scalar_select %p606, %s37, 1
          %s608 = smul.addr %s607, 4
          %s609 = scalar_lea.vmem %s3, %s608
        $region32: #{encoder_forward.1} parent=15 // pred_fallthru
          _
        // Predicated region
        $region33: #{encoder_forward.1} parent=15 // pred_check
          %p610 = pneg %p165
        $region34: #{encoder_forward.1} parent=15 // pred_check_branch
          %612 = sbr.rel (%p610) target = $region36
        $region35: #{encoder_forward.1} parent=15 // pred_region
          %p613 = scmp.lt.s32.totalorder %s37, 1
          %s614 = scalar_select %p613, %s37, 1
          %s615 = smul.addr %s614, 16
          %s616 = smul.addr %s615, 8
          %s617 = scalar_lea.vmem %s4, %s616
        $region36: #{encoder_forward.1} parent=15 // pred_fallthru
          _
        // Predicated region
        $region37: #{encoder_forward.1} parent=15 // pred_check
          %p618 = pneg %p191
        $region38: #{encoder_forward.1} parent=15 // pred_check_branch
          %620 = sbr.rel (%p618) target = $region40
        $region39: #{encoder_forward.1} parent=15 // pred_region
          %p621 = scmp.lt.s32.totalorder %s37, 1
          %s622 = scalar_select %p621, %s37, 1
          %s623 = smul.addr %s622, 4
          %s624 = scalar_lea.vmem %s5, %s623
        $region40: #{encoder_forward.1} parent=15 // pred_fallthru
          _
        // Predicated region
        $region41: #{encoder_forward.1} parent=15 // pred_check
          %p625 = pneg %p217
        $region42: #{encoder_forward.1} parent=15 // pred_check_branch
          %627 = sbr.rel (%p625) target = $region44
        $region43: #{encoder_forward.1} parent=15 // pred_region
          %p628 = scmp.lt.s32.totalorder %s37, 1
          %s629 = scalar_select %p628, %s37, 1
          %s630 = smul.addr %s629, 16
          %s631 = smul.addr %s630, 8
          %s632 = scalar_lea.vmem %s6, %s631
        $region44: #{encoder_forward.1} parent=15 // pred_fallthru
          _
        // Predicated region
        $region45: #{encoder_forward.1} parent=15 // pred_check
          %p633 = pneg %p243
        $region46: #{encoder_forward.1} parent=15 // pred_check_branch
          %635 = sbr.rel (%p633) target = $region48
        $region47: #{encoder_forward.1} parent=15 // pred_region
          %p636 = scmp.lt.s32.totalorder %s37, 1
          %s637 = scalar_select %p636, %s37, 1
          %s638 = smul.addr %s637, 4
          %s639 = scalar_lea.vmem %s7, %s638
        $region48: #{encoder_forward.1} parent=15 // pred_fallthru
          _
        // Predicated region
        $region49: #{encoder_forward.1} parent=15 // pred_check
          %p640 = pneg %p269
        $region50: #{encoder_forward.1} parent=15 // pred_check_branch
          %642 = sbr.rel (%p640) target = $region52
        $region51: #{encoder_forward.1} parent=15 // pred_region
          %p643 = scmp.lt.s32.totalorder %s37, 1
          %s644 = scalar_select %p643, %s37, 1
          %s645 = smul.addr %s644, 8
          %s646 = smul.addr %s645, 8
          %s647 = scalar_lea.vmem %s8, %s646
        $region52: #{encoder_forward.1} parent=15 // pred_fallthru
          _
        // Predicated region
        $region53: #{encoder_forward.1} parent=15 // pred_check
          %p648 = pneg %p295
        $region54: #{encoder_forward.1} parent=15 // pred_check_branch
          %650 = sbr.rel (%p648) target = $region56
        $region55: #{encoder_forward.1} parent=15 // pred_region
          %p651 = scmp.lt.s32.totalorder %s37, 1
          %s652 = scalar_select %p651, %s37, 1
          %s653 = scalar_lea.vmem %s9, %s652
        $region56: #{encoder_forward.1} parent=15 // pred_fallthru
          _
        // Predicated region
        $region57: #{encoder_forward.1} parent=15 // pred_check
          %p654 = pneg %p321
        $region58: #{encoder_forward.1} parent=15 // pred_check_branch
          %656 = sbr.rel (%p654) target = $region60
        $region59: #{encoder_forward.1} parent=15 // pred_region
          %p657 = scmp.lt.s32.totalorder %s37, 1
          %s658 = scalar_select %p657, %s37, 1
          %s659 = scalar_lea.vmem %s10, %s658
        $region60: #{encoder_forward.1} parent=15 // pred_fallthru
          _
        // Predicated region
        $region61: #{encoder_forward.1} parent=15 // pred_check
          %p660 = pneg %p347
        $region62: #{encoder_forward.1} parent=15 // pred_check_branch
          %662 = sbr.rel (%p660) target = $region64
        $region63: #{encoder_forward.1} parent=15 // pred_region
          %p663 = scmp.lt.s32.totalorder %s37, 1
          %s664 = scalar_select %p663, %s37, 1
          %s665 = scalar_lea.vmem %s11, %s664
        $region64: #{encoder_forward.1} parent=15 // pred_fallthru
          _
        // Predicated region
        $region65: #{encoder_forward.1} parent=15 // pred_check
          %p666 = pneg %p373
        $region66: #{encoder_forward.1} parent=15 // pred_check_branch
          %668 = sbr.rel (%p666) target = $region68
        $region67: #{encoder_forward.1} parent=15 // pred_region
          %p669 = scmp.lt.s32.totalorder %s37, 1
          %s670 = scalar_select %p669, %s37, 1
          %s671 = smul.addr %s670, 4
          %s672 = smul.addr %s671, 8
          %s673 = scalar_lea.vmem %s12, %s672
        $region68: #{encoder_forward.1} parent=15 // pred_fallthru
          _
        // Predicated region
        $region69: #{encoder_forward.1} parent=15 // pred_check
          %p674 = pneg %p399
        $region70: #{encoder_forward.1} parent=15 // pred_check_branch
          %676 = sbr.rel (%p674) target = $region72
        $region71: #{encoder_forward.1} parent=15 // pred_region
          %p677 = scmp.lt.s32.totalorder %s37, 1
          %s678 = scalar_select %p677, %s37, 1
          %s679 = scalar_lea.vmem %s13, %s678
        $region72: #{encoder_forward.1} parent=15 // pred_fallthru
          _
        // Predicated region
        $region73: #{encoder_forward.1} parent=15 // pred_check
          %p680 = pneg %p425
        $region74: #{encoder_forward.1} parent=15 // pred_check_branch
          %682 = sbr.rel (%p680) target = $region76
        $region75: #{encoder_forward.1} parent=15 // pred_region
          %p683 = scmp.lt.s32.totalorder %s37, 1
          %s684 = scalar_select %p683, %s37, 1
          %s685 = smul.addr %s684, 8
          %s686 = smul.addr %s685, 8
          %s687 = scalar_lea.vmem %s14, %s686
        $region76: #{encoder_forward.1} parent=15 // pred_fallthru
          _
        // Predicated region
        $region77: #{encoder_forward.1} parent=15 // pred_check
          %p688 = pneg %p451
        $region78: #{encoder_forward.1} parent=15 // pred_check_branch
          %690 = sbr.rel (%p688) target = $region80
        $region79: #{encoder_forward.1} parent=15 // pred_region
          %p691 = scmp.lt.s32.totalorder %s37, 1
          %s692 = scalar_select %p691, %s37, 1
          %s693 = scalar_lea.vmem %s15, %s692
        $region80: #{encoder_forward.1} parent=15 // pred_fallthru
          _
        // Predicated region
        $region81: #{encoder_forward.1} parent=15 // pred_check
          %p694 = pneg %p477
        $region82: #{encoder_forward.1} parent=15 // pred_check_branch
          %696 = sbr.rel (%p694) target = $region84
        $region83: #{encoder_forward.1} parent=15 // pred_region
          %p697 = scmp.lt.s32.totalorder %s37, 1
          %s698 = scalar_select %p697, %s37, 1
          %s699 = scalar_lea.vmem %s16, %s698
        $region84: #{encoder_forward.1} parent=15 // pred_fallthru
          _
        // Predicated region
        $region85: #{encoder_forward.1} parent=15 // pred_check
          %p700 = pneg %p503
        $region86: #{encoder_forward.1} parent=15 // pred_check_branch
          %702 = sbr.rel (%p700) target = $region88
        $region87: #{encoder_forward.1} parent=15 // pred_region
          %p703 = scmp.lt.s32.totalorder %s37, 1
          %s704 = scalar_select %p703, %s37, 1
          %s705 = scalar_lea.vmem %s17, %s704
        $region88: #{encoder_forward.1} parent=15 // pred_fallthru
          _
      $region16: #{encoder_forward.1} parent=5 // pred_fallthru
        _
      %p706 = scmp.le.s32.totalorder 1, %s29
      %p707 = scmp.lt.s32.totalorder %s29, 5
      %p708 = pnand %p706, %p707
      %p709 = pneg %p708
      // Predicated region
      $region89: #{encoder_forward.1} parent=5 // pred_check
        _
      $region90: #{encoder_forward.1} parent=5 // pred_check_branch
        %711 = sbr.rel (%p708) target = $region92
      $region91: #{encoder_forward.1} parent=5 // pred_region
        %s712 = ssub.s32 %s29, 1
        %p713 = scmp.lt.s32.totalorder %s38, 1
        %s714 = scalar_select %p713, %s38, 1
        %s715 = smul.addr %s714, 8
        %s716 = scalar_lea.vmem %s0, %s715
        %p717 = pneg %p67
        %p718 = pneg %p64
        %p719 = scmp.lt.s32.totalorder %s38, 1
        %s720 = scalar_select %p719, %s38, 1
        %s721 = scalar_lea.vmem %s1, %s720
        %p722 = pneg %p93
        %p723 = pneg %p90
        %p724 = scmp.lt.s32.totalorder %s39, 1
        %s725 = scalar_select %p724, %s39, 1
        %s726 = smul.addr %s725, 16
        %s727 = smul.addr %s726, 8
        %s728 = scalar_lea.vmem %s2, %s727
        %p729 = pneg %p119
        %p730 = pneg %p116
        %p731 = scmp.lt.s32.totalorder %s39, 1
        %s732 = scalar_select %p731, %s39, 1
        %s733 = smul.addr %s732, 4
        %s734 = scalar_lea.vmem %s3, %s733
        %p735 = pneg %p145
        %p736 = pneg %p142
        %p737 = scmp.lt.s32.totalorder %s39, 1
        %s738 = scalar_select %p737, %s39, 1
        %s739 = smul.addr %s738, 16
        %s740 = smul.addr %s739, 8
        %s741 = scalar_lea.vmem %s4, %s740
        %p742 = pneg %p171
        %p743 = pneg %p168
        %p744 = scmp.lt.s32.totalorder %s39, 1
        %s745 = scalar_select %p744, %s39, 1
        %s746 = smul.addr %s745, 4
        %s747 = scalar_lea.vmem %s5, %s746
        %p748 = pneg %p197
        %p749 = pneg %p194
        %p750 = scmp.lt.s32.totalorder %s39, 1
        %s751 = scalar_select %p750, %s39, 1
        %s752 = smul.addr %s751, 16
        %s753 = smul.addr %s752, 8
        %s754 = scalar_lea.vmem %s6, %s753
        %p755 = pneg %p223
        %p756 = pneg %p220
        %p757 = scmp.lt.s32.totalorder %s39, 1
        %s758 = scalar_select %p757, %s39, 1
        %s759 = smul.addr %s758, 4
        %s760 = scalar_lea.vmem %s7, %s759
        %p761 = pneg %p249
        %p762 = pneg %p246
        %p763 = scmp.lt.s32.totalorder %s39, 1
        %s764 = scalar_select %p763, %s39, 1
        %s765 = smul.addr %s764, 8
        %s766 = smul.addr %s765, 8
        %s767 = scalar_lea.vmem %s8, %s766
        %p768 = pneg %p275
        %p769 = pneg %p272
        %p770 = scmp.lt.s32.totalorder %s39, 1
        %s771 = scalar_select %p770, %s39, 1
        %s772 = scalar_lea.vmem %s9, %s771
        %p773 = pneg %p301
        %p774 = pneg %p298
        %p775 = scmp.lt.s32.totalorder %s39, 1
        %s776 = scalar_select %p775, %s39, 1
        %s777 = scalar_lea.vmem %s10, %s776
        %p778 = pneg %p327
        %p779 = pneg %p324
        %p780 = scmp.lt.s32.totalorder %s39, 1
        %s781 = scalar_select %p780, %s39, 1
        %s782 = scalar_lea.vmem %s11, %s781
        %p783 = pneg %p353
        %p784 = pneg %p350
        %p785 = scmp.lt.s32.totalorder %s39, 1
        %s786 = scalar_select %p785, %s39, 1
        %s787 = smul.addr %s786, 4
        %s788 = smul.addr %s787, 8
        %s789 = scalar_lea.vmem %s12, %s788
        %p790 = pneg %p379
        %p791 = pneg %p376
        %p792 = scmp.lt.s32.totalorder %s39, 1
        %s793 = scalar_select %p792, %s39, 1
        %s794 = scalar_lea.vmem %s13, %s793
        %p795 = pneg %p405
        %p796 = pneg %p402
        %p797 = scmp.lt.s32.totalorder %s39, 1
        %s798 = scalar_select %p797, %s39, 1
        %s799 = smul.addr %s798, 8
        %s800 = smul.addr %s799, 8
        %s801 = scalar_lea.vmem %s14, %s800
        %p802 = pneg %p431
        %p803 = pneg %p428
        %p804 = scmp.lt.s32.totalorder %s39, 1
        %s805 = scalar_select %p804, %s39, 1
        %s806 = scalar_lea.vmem %s15, %s805
        %p807 = pneg %p457
        %p808 = pneg %p454
        %p809 = scmp.lt.s32.totalorder %s39, 1
        %s810 = scalar_select %p809, %s39, 1
        %s811 = scalar_lea.vmem %s16, %s810
        %p812 = pneg %p483
        %p813 = pneg %p480
        %p814 = scmp.lt.s32.totalorder %s39, 1
        %s815 = scalar_select %p814, %s39, 1
        %s816 = scalar_lea.vmem %s17, %s815
        %p817 = pneg %p509
        %p818 = pneg %p506
        %p819 = pneg %p535
        %p820 = pneg %p532
        %s821 = sand.u32 %s522, 1
        %s822 = scalar_lea.sflag [#allocation3], %s821
        %s823 = sand.u32 %s522, 1
        %s824 = smul.addr %s823, 8
        %s825 = scalar_lea.vmem [#allocation2], %s824
        %p826 = pneg %p563
        %p827 = pneg %p560
        %p828 = scmp.lt.s32.totalorder %s38, 1
        %s829 = scalar_select %p828, %s38, 1
        %p830 = scmp.lt.s32.totalorder %s39, 1
        %s831 = scalar_select %p830, %s39, 1
        %s832 = smul.addr %s831, 4
        %s833 = smul.addr %s829, 8
        %s834 = sadd.s32 %s832, %s833
        %s835 = smul.addr %s834, 8
        %s836 = scalar_lea.vmem %s19, %s835
        %p837 = scmp.lt.s32.totalorder %s38, 1
        %s838 = scalar_select %p837, %s38, 1
        %s839 = smul.addr %s838, 8
        %s840 = scalar_lea.vmem %s0, %s839
        %p841 = scmp.lt.s32.totalorder %s38, 1
        %s842 = scalar_select %p841, %s38, 1
        %s843 = scalar_lea.vmem %s1, %s842
        %p844 = scmp.lt.s32.totalorder %s39, 1
        %s845 = scalar_select %p844, %s39, 1
        %s846 = smul.addr %s845, 16
        %s847 = smul.addr %s846, 8
        %s848 = scalar_lea.vmem %s2, %s847
        %p849 = scmp.lt.s32.totalorder %s39, 1
        %s850 = scalar_select %p849, %s39, 1
        %s851 = smul.addr %s850, 4
        %s852 = scalar_lea.vmem %s3, %s851
        %p853 = scmp.lt.s32.totalorder %s39, 1
        %s854 = scalar_select %p853, %s39, 1
        %s855 = smul.addr %s854, 16
        %s856 = smul.addr %s855, 8
        %s857 = scalar_lea.vmem %s4, %s856
        %p858 = scmp.lt.s32.totalorder %s39, 1
        %s859 = scalar_select %p858, %s39, 1
        %s860 = smul.addr %s859, 4
        %s861 = scalar_lea.vmem %s5, %s860
        %p862 = scmp.lt.s32.totalorder %s39, 1
        %s863 = scalar_select %p862, %s39, 1
        %s864 = smul.addr %s863, 16
        %s865 = smul.addr %s864, 8
        %s866 = scalar_lea.vmem %s6, %s865
        %p867 = scmp.lt.s32.totalorder %s39, 1
        %s868 = scalar_select %p867, %s39, 1
        %s869 = smul.addr %s868, 4
        %s870 = scalar_lea.vmem %s7, %s869
        %p871 = scmp.lt.s32.totalorder %s39, 1
        %s872 = scalar_select %p871, %s39, 1
        %s873 = smul.addr %s872, 8
        %s874 = smul.addr %s873, 8
        %s875 = scalar_lea.vmem %s8, %s874
        %p876 = scmp.lt.s32.totalorder %s39, 1
        %s877 = scalar_select %p876, %s39, 1
        %s878 = scalar_lea.vmem %s9, %s877
        %p879 = scmp.lt.s32.totalorder %s39, 1
        %s880 = scalar_select %p879, %s39, 1
        %s881 = scalar_lea.vmem %s10, %s880
        %p882 = scmp.lt.s32.totalorder %s39, 1
        %s883 = scalar_select %p882, %s39, 1
        %s884 = scalar_lea.vmem %s11, %s883
        %p885 = scmp.lt.s32.totalorder %s39, 1
        %s886 = scalar_select %p885, %s39, 1
        %s887 = smul.addr %s886, 4
        %s888 = smul.addr %s887, 8
        %s889 = scalar_lea.vmem %s12, %s888
        %p890 = scmp.lt.s32.totalorder %s39, 1
        %s891 = scalar_select %p890, %s39, 1
        %s892 = scalar_lea.vmem %s13, %s891
        %p893 = scmp.lt.s32.totalorder %s39, 1
        %s894 = scalar_select %p893, %s39, 1
        %s895 = smul.addr %s894, 8
        %s896 = smul.addr %s895, 8
        %s897 = scalar_lea.vmem %s14, %s896
        %p898 = scmp.lt.s32.totalorder %s39, 1
        %s899 = scalar_select %p898, %s39, 1
        %s900 = scalar_lea.vmem %s15, %s899
        %p901 = scmp.lt.s32.totalorder %s39, 1
        %s902 = scalar_select %p901, %s39, 1
        %s903 = scalar_lea.vmem %s16, %s902
        %p904 = scmp.lt.s32.totalorder %s39, 1
        %s905 = scalar_select %p904, %s39, 1
        %s906 = scalar_lea.vmem %s17, %s905
        %p907 = scmp.lt.s32.totalorder %s38, 1
        %s908 = scalar_select %p907, %s38, 1
        %p909 = scmp.lt.s32.totalorder %s39, 1
        %s910 = scalar_select %p909, %s39, 1
        %s911 = smul.addr %s910, 4
        %s912 = smul.addr %s908, 8
        %s913 = sadd.s32 %s911, %s912
        %s914 = smul.addr %s913, 8
        %s915 = scalar_lea.vmem %s19, %s914
        %p917 = scmp.eq.s32.totalorder %s39, 0
        // Predicated region
        $region93: #{encoder_forward.1} parent=91 // pred_check
          %p918 = pneg %p917
        $region94: #{encoder_forward.1} parent=91 // pred_check_branch
          %920 = sbr.rel (%p918) target = $region96
        $region95: #{encoder_forward.1} parent=91 // pred_region
          %v921 = vld [vmem:[%s840] sm:$0xff]
          %vm922 = vcmask 261120
          %923 = vst.msk [vmem:[%s825] sm:$0xff] %vm922, %v921
        $region96: #{encoder_forward.1} parent=91 // pred_fallthru
          _
        %v924 = vld [vmem:[%s825] sm:$0xff]
        %v925 = vpack.c.bf16 %v924, %v924
        %v926 = vld [vmem:[%s848] sm:$0xff]
        %v927 = vld [vmem:[%s848 + $0x8] sm:$0xff]
        %v928 = vld [vmem:[%s848 + $0x10] sm:$0xff]
        %v929 = vld [vmem:[%s848 + $0x18] sm:$0xff]
        %v930 = vld [vmem:[%s848 + $0x20] sm:$0xff]
        %v931 = vld [vmem:[%s848 + $0x28] sm:$0xff]
        %v932 = vld [vmem:[%s848 + $0x30] sm:$0xff]
        %v933 = vld [vmem:[%s848 + $0x38] sm:$0xff]
        %v934 = vld [vmem:[%s848 + $0x40] sm:$0xff]
        %v935 = vld [vmem:[%s848 + $0x48] sm:$0xff]
        %v936 = vld [vmem:[%s848 + $0x50] sm:$0xff]
        %v937 = vld [vmem:[%s848 + $0x58] sm:$0xff]
        %v938 = vld [vmem:[%s848 + $0x60] sm:$0xff]
        %v939 = vld [vmem:[%s848 + $0x68] sm:$0xff]
        %v940 = vld [vmem:[%s848 + $0x70] sm:$0xff]
        %v941 = vld [vmem:[%s848 + $0x78] sm:$0xff]
        %v942 = vpack.c.bf16 %v927, %v926
        %v943 = vpack.c.bf16 %v929, %v928
        %v944 = vpack.c.bf16 %v931, %v930
        %v945 = vpack.c.bf16 %v933, %v932
        %v946 = vpack.c.bf16 %v935, %v934
        %v947 = vpack.c.bf16 %v937, %v936
        %v948 = vpack.c.bf16 %v939, %v938
        %v949 = vpack.c.bf16 %v941, %v940
        %v950 = vld [vmem:[%s852] sm:$0x1]
        %v951 = vld [vmem:[%s852 + $0x1] sm:$0x1]
        %v952 = vld [vmem:[%s852 + $0x2] sm:$0x1]
        %v953 = vld [vmem:[%s852 + $0x3] sm:$0x1]
        %v958 = vlaneseq
        %v959 = vshrl.u32 %v958, 7
        %v960 = vsub.s32 0, %v959
        %v961 = vrot.slane %v950, %v960
        %v962 = vlaneseq
        %v963 = vshrl.u32 %v962, 7
        %v964 = vsub.s32 0, %v963
        %v965 = vrot.slane %v951, %v964
        %v966 = vlaneseq
        %v967 = vshrl.u32 %v966, 7
        %v968 = vsub.s32 0, %v967
        %v969 = vrot.slane %v952, %v968
        %v970 = vlaneseq
        %v971 = vshrl.u32 %v970, 7
        %v972 = vsub.s32 0, %v971
        %v973 = vrot.slane %v953, %v972
        %vm978 = vcmask 261120
        %v980 = vsel %vm978, %v925, 0
        %982 = vmatprep.subr.bf16.mxu0 0
        %983 = vmatpush1.bf16.msra.mxu0 0
        %984 = vmatprep.subr.bf16.mxu0 0
        %985 = vmatpush1.bf16.msra.mxu0 0
        %986 = vmatprep.subr.bf16.mxu0 0
        %987 = vmatpush1.bf16.msra.mxu0 0
        %988 = vmatprep.subr.bf16.mxu0 0
        %989 = vmatpush1.bf16.msra.mxu0 0
        %990 = vmatprep.subr.bf16.mxu0 0
        %991 = vmatpush1.bf16.msra.mxu0 0
        %992 = vmatprep.subr.bf16.mxu0 0
        %993 = vmatpush1.bf16.msra.mxu0 0
        %994 = vmatprep.subr.bf16.mxu0 0
        %995 = vmatpush1.bf16.msra.mxu0 %v943
        %996 = vmatprep.subr.bf16.mxu0 0
        %997 = vmatpush1.bf16.msra.mxu0 %v942
        %998 = vmatprep.subr.bf16.mxu0 0
        %999 = vmatpush2.bf16.msra.mxu0 0
        %1000 = vmatprep.subr.bf16.mxu0 0
        %1001 = vmatpush2.bf16.msra.mxu0 0
        %1002 = vmatprep.subr.bf16.mxu0 0
        %1003 = vmatpush2.bf16.msra.mxu0 0
        %1004 = vmatprep.subr.bf16.mxu0 0
        %1005 = vmatpush2.bf16.msra.mxu0 0
        %1006 = vmatprep.subr.bf16.mxu0 0
        %1007 = vmatpush2.bf16.msra.mxu0 0
        %1008 = vmatprep.subr.bf16.mxu0 0
        %1009 = vmatpush2.bf16.msra.mxu0 0
        %1010 = vmatprep.subr.bf16.mxu0 0
        %1011 = vmatpush2.bf16.msra.mxu0 0
        %1012 = vmatprep.subr.bf16.mxu0 0
        %1013 = vmatpush2.bf16.msra.mxu0 0
        %1014 = vmatprep.mubr.bf16.mxu0 0
        %1015 = vmatmul.mubr.bf16.gmra.mxu0 %v980
        %v1016 = vpop.f32.mrf.mxu0
        %v1017 = vadd.f32 %v961, %v1016
        %v1018 = vpop.f32.mrf.mxu0
        %v1019 = vpop.f32.mrf.mxu0
        %v1020 = vpop.f32.mrf.mxu0
        %1021 = vdwg.mxu0
        %1022 = vmatprep.subr.bf16.mxu0 0
        %1023 = vmatpush1.bf16.msra.mxu0 0
        %1024 = vmatprep.subr.bf16.mxu0 0
        %1025 = vmatpush1.bf16.msra.mxu0 0
        %1026 = vmatprep.subr.bf16.mxu0 0
        %1027 = vmatpush1.bf16.msra.mxu0 0
        %1028 = vmatprep.subr.bf16.mxu0 0
        %1029 = vmatpush1.bf16.msra.mxu0 0
        %1030 = vmatprep.subr.bf16.mxu0 0
        %1031 = vmatpush1.bf16.msra.mxu0 0
        %1032 = vmatprep.subr.bf16.mxu0 0
        %1033 = vmatpush1.bf16.msra.mxu0 0
        %1034 = vmatprep.subr.bf16.mxu0 0
        %1035 = vmatpush1.bf16.msra.mxu0 %v945
        %1036 = vmatprep.subr.bf16.mxu0 0
        %1037 = vmatpush1.bf16.msra.mxu0 %v944
        %1038 = vmatprep.subr.bf16.mxu0 0
        %1039 = vmatpush2.bf16.msra.mxu0 0
        %1040 = vmatprep.subr.bf16.mxu0 0
        %1041 = vmatpush2.bf16.msra.mxu0 0
        %1042 = vmatprep.subr.bf16.mxu0 0
        %1043 = vmatpush2.bf16.msra.mxu0 0
        %1044 = vmatprep.subr.bf16.mxu0 0
        %1045 = vmatpush2.bf16.msra.mxu0 0
        %1046 = vmatprep.subr.bf16.mxu0 0
        %1047 = vmatpush2.bf16.msra.mxu0 0
        %1048 = vmatprep.subr.bf16.mxu0 0
        %1049 = vmatpush2.bf16.msra.mxu0 0
        %1050 = vmatprep.subr.bf16.mxu0 0
        %1051 = vmatpush2.bf16.msra.mxu0 0
        %1052 = vmatprep.subr.bf16.mxu0 0
        %1053 = vmatpush2.bf16.msra.mxu0 0
        %1054 = vmatprep.mubr.bf16.mxu0 0
        %1055 = vmatmul.mubr.bf16.gmra.mxu0 %v980
        %v1056 = vpop.f32.mrf.mxu0
        %v1057 = vadd.f32 %v965, %v1056
        %v1058 = vpop.f32.mrf.mxu0
        %v1059 = vpop.f32.mrf.mxu0
        %v1060 = vpop.f32.mrf.mxu0
        %1061 = vdwg.mxu0
        %1062 = vmatprep.subr.bf16.mxu0 0
        %1063 = vmatpush1.bf16.msra.mxu0 0
        %1064 = vmatprep.subr.bf16.mxu0 0
        %1065 = vmatpush1.bf16.msra.mxu0 0
        %1066 = vmatprep.subr.bf16.mxu0 0
        %1067 = vmatpush1.bf16.msra.mxu0 0
        %1068 = vmatprep.subr.bf16.mxu0 0
        %1069 = vmatpush1.bf16.msra.mxu0 0
        %1070 = vmatprep.subr.bf16.mxu0 0
        %1071 = vmatpush1.bf16.msra.mxu0 0
        %1072 = vmatprep.subr.bf16.mxu0 0
        %1073 = vmatpush1.bf16.msra.mxu0 0
        %1074 = vmatprep.subr.bf16.mxu0 0
        %1075 = vmatpush1.bf16.msra.mxu0 %v947
        %1076 = vmatprep.subr.bf16.mxu0 0
        %1077 = vmatpush1.bf16.msra.mxu0 %v946
        %1078 = vmatprep.subr.bf16.mxu0 0
        %1079 = vmatpush2.bf16.msra.mxu0 0
        %1080 = vmatprep.subr.bf16.mxu0 0
        %1081 = vmatpush2.bf16.msra.mxu0 0
        %1082 = vmatprep.subr.bf16.mxu0 0
        %1083 = vmatpush2.bf16.msra.mxu0 0
        %1084 = vmatprep.subr.bf16.mxu0 0
        %1085 = vmatpush2.bf16.msra.mxu0 0
        %1086 = vmatprep.subr.bf16.mxu0 0
        %1087 = vmatpush2.bf16.msra.mxu0 0
        %1088 = vmatprep.subr.bf16.mxu0 0
        %1089 = vmatpush2.bf16.msra.mxu0 0
        %1090 = vmatprep.subr.bf16.mxu0 0
        %1091 = vmatpush2.bf16.msra.mxu0 0
        %1092 = vmatprep.subr.bf16.mxu0 0
        %1093 = vmatpush2.bf16.msra.mxu0 0
        %1094 = vmatprep.mubr.bf16.mxu0 0
        %1095 = vmatmul.mubr.bf16.gmra.mxu0 %v980
        %v1096 = vpop.f32.mrf.mxu0
        %v1097 = vadd.f32 %v969, %v1096
        %v1098 = vpop.f32.mrf.mxu0
        %v1099 = vpop.f32.mrf.mxu0
        %v1100 = vpop.f32.mrf.mxu0
        %1101 = vdwg.mxu0
        %1102 = vmatprep.subr.bf16.mxu0 0
        %1103 = vmatpush1.bf16.msra.mxu0 0
        %1104 = vmatprep.subr.bf16.mxu0 0
        %1105 = vmatpush1.bf16.msra.mxu0 0
        %1106 = vmatprep.subr.bf16.mxu0 0
        %1107 = vmatpush1.bf16.msra.mxu0 0
        %1108 = vmatprep.subr.bf16.mxu0 0
        %1109 = vmatpush1.bf16.msra.mxu0 0
        %1110 = vmatprep.subr.bf16.mxu0 0
        %1111 = vmatpush1.bf16.msra.mxu0 0
        %1112 = vmatprep.subr.bf16.mxu0 0
        %1113 = vmatpush1.bf16.msra.mxu0 0
        %1114 = vmatprep.subr.bf16.mxu0 0
        %1115 = vmatpush1.bf16.msra.mxu0 %v949
        %1116 = vmatprep.subr.bf16.mxu0 0
        %1117 = vmatpush1.bf16.msra.mxu0 %v948
        %1118 = vmatprep.subr.bf16.mxu0 0
        %1119 = vmatpush2.bf16.msra.mxu0 0
        %1120 = vmatprep.subr.bf16.mxu0 0
        %1121 = vmatpush2.bf16.msra.mxu0 0
        %1122 = vmatprep.subr.bf16.mxu0 0
        %1123 = vmatpush2.bf16.msra.mxu0 0
        %1124 = vmatprep.subr.bf16.mxu0 0
        %1125 = vmatpush2.bf16.msra.mxu0 0
        %1126 = vmatprep.subr.bf16.mxu0 0
        %1127 = vmatpush2.bf16.msra.mxu0 0
        %1128 = vmatprep.subr.bf16.mxu0 0
        %1129 = vmatpush2.bf16.msra.mxu0 0
        %1130 = vmatprep.subr.bf16.mxu0 0
        %1131 = vmatpush2.bf16.msra.mxu0 0
        %1132 = vmatprep.subr.bf16.mxu0 0
        %1133 = vmatpush2.bf16.msra.mxu0 0
        %1134 = vmatprep.mubr.bf16.mxu0 0
        %1135 = vmatmul.mubr.bf16.gmra.mxu0 %v980
        %v1136 = vpop.f32.mrf.mxu0
        %v1137 = vadd.f32 %v973, %v1136
        %v1138 = vpop.f32.mrf.mxu0
        %v1139 = vpop.f32.mrf.mxu0
        %v1140 = vpop.f32.mrf.mxu0
        %1141 = vdwg.mxu0
        %v1142 = vld [vmem:[%s857] sm:$0xff]
        %v1143 = vld [vmem:[%s857 + $0x8] sm:$0xff]
        %v1144 = vld [vmem:[%s857 + $0x10] sm:$0xff]
        %v1145 = vld [vmem:[%s857 + $0x18] sm:$0xff]
        %v1146 = vld [vmem:[%s857 + $0x20] sm:$0xff]
        %v1147 = vld [vmem:[%s857 + $0x28] sm:$0xff]
        %v1148 = vld [vmem:[%s857 + $0x30] sm:$0xff]
        %v1149 = vld [vmem:[%s857 + $0x38] sm:$0xff]
        %v1150 = vld [vmem:[%s857 + $0x40] sm:$0xff]
        %v1151 = vld [vmem:[%s857 + $0x48] sm:$0xff]
        %v1152 = vld [vmem:[%s857 + $0x50] sm:$0xff]
        %v1153 = vld [vmem:[%s857 + $0x58] sm:$0xff]
        %v1154 = vld [vmem:[%s857 + $0x60] sm:$0xff]
        %v1155 = vld [vmem:[%s857 + $0x68] sm:$0xff]
        %v1156 = vld [vmem:[%s857 + $0x70] sm:$0xff]
        %v1157 = vld [vmem:[%s857 + $0x78] sm:$0xff]
        %v1158 = vpack.c.bf16 %v1143, %v1142
        %v1159 = vpack.c.bf16 %v1145, %v1144
        %v1160 = vpack.c.bf16 %v1147, %v1146
        %v1161 = vpack.c.bf16 %v1149, %v1148
        %v1162 = vpack.c.bf16 %v1151, %v1150
        %v1163 = vpack.c.bf16 %v1153, %v1152
        %v1164 = vpack.c.bf16 %v1155, %v1154
        %v1165 = vpack.c.bf16 %v1157, %v1156
        %v1166 = vld [vmem:[%s861] sm:$0x1]
        %v1167 = vld [vmem:[%s861 + $0x1] sm:$0x1]
        %v1168 = vld [vmem:[%s861 + $0x2] sm:$0x1]
        %v1169 = vld [vmem:[%s861 + $0x3] sm:$0x1]
        %v1174 = vlaneseq
        %v1175 = vshrl.u32 %v1174, 7
        %v1176 = vsub.s32 0, %v1175
        %v1177 = vrot.slane %v1166, %v1176
        %v1178 = vlaneseq
        %v1179 = vshrl.u32 %v1178, 7
        %v1180 = vsub.s32 0, %v1179
        %v1181 = vrot.slane %v1167, %v1180
        %v1182 = vlaneseq
        %v1183 = vshrl.u32 %v1182, 7
        %v1184 = vsub.s32 0, %v1183
        %v1185 = vrot.slane %v1168, %v1184
        %v1186 = vlaneseq
        %v1187 = vshrl.u32 %v1186, 7
        %v1188 = vsub.s32 0, %v1187
        %v1189 = vrot.slane %v1169, %v1188
        %1194 = vmatprep.subr.bf16.mxu0 0
        %1195 = vmatpush1.bf16.msra.mxu0 0
        %1196 = vmatprep.subr.bf16.mxu0 0
        %1197 = vmatpush1.bf16.msra.mxu0 0
        %1198 = vmatprep.subr.bf16.mxu0 0
        %1199 = vmatpush1.bf16.msra.mxu0 0
        %1200 = vmatprep.subr.bf16.mxu0 0
        %1201 = vmatpush1.bf16.msra.mxu0 0
        %1202 = vmatprep.subr.bf16.mxu0 0
        %1203 = vmatpush1.bf16.msra.mxu0 0
        %1204 = vmatprep.subr.bf16.mxu0 0
        %1205 = vmatpush1.bf16.msra.mxu0 0
        %1206 = vmatprep.subr.bf16.mxu0 0
        %1207 = vmatpush1.bf16.msra.mxu0 %v1159
        %1208 = vmatprep.subr.bf16.mxu0 0
        %1209 = vmatpush1.bf16.msra.mxu0 %v1158
        %1210 = vmatprep.subr.bf16.mxu0 0
        %1211 = vmatpush2.bf16.msra.mxu0 0
        %1212 = vmatprep.subr.bf16.mxu0 0
        %1213 = vmatpush2.bf16.msra.mxu0 0
        %1214 = vmatprep.subr.bf16.mxu0 0
        %1215 = vmatpush2.bf16.msra.mxu0 0
        %1216 = vmatprep.subr.bf16.mxu0 0
        %1217 = vmatpush2.bf16.msra.mxu0 0
        %1218 = vmatprep.subr.bf16.mxu0 0
        %1219 = vmatpush2.bf16.msra.mxu0 0
        %1220 = vmatprep.subr.bf16.mxu0 0
        %1221 = vmatpush2.bf16.msra.mxu0 0
        %1222 = vmatprep.subr.bf16.mxu0 0
        %1223 = vmatpush2.bf16.msra.mxu0 0
        %1224 = vmatprep.subr.bf16.mxu0 0
        %1225 = vmatpush2.bf16.msra.mxu0 0
        %1226 = vmatprep.mubr.bf16.mxu0 0
        %1227 = vmatmul.mubr.bf16.gmra.mxu0 %v980
        %v1228 = vpop.f32.mrf.mxu0
        %v1229 = vadd.f32 %v1177, %v1228
        %v1230 = vpop.f32.mrf.mxu0
        %v1231 = vpop.f32.mrf.mxu0
        %v1232 = vpop.f32.mrf.mxu0
        %1233 = vdwg.mxu0
        %1234 = vmatprep.subr.bf16.mxu0 0
        %1235 = vmatpush1.bf16.msra.mxu0 0
        %1236 = vmatprep.subr.bf16.mxu0 0
        %1237 = vmatpush1.bf16.msra.mxu0 0
        %1238 = vmatprep.subr.bf16.mxu0 0
        %1239 = vmatpush1.bf16.msra.mxu0 0
        %1240 = vmatprep.subr.bf16.mxu0 0
        %1241 = vmatpush1.bf16.msra.mxu0 0
        %1242 = vmatprep.subr.bf16.mxu0 0
        %1243 = vmatpush1.bf16.msra.mxu0 0
        %1244 = vmatprep.subr.bf16.mxu0 0
        %1245 = vmatpush1.bf16.msra.mxu0 0
        %1246 = vmatprep.subr.bf16.mxu0 0
        %1247 = vmatpush1.bf16.msra.mxu0 %v1161
        %1248 = vmatprep.subr.bf16.mxu0 0
        %1249 = vmatpush1.bf16.msra.mxu0 %v1160
        %1250 = vmatprep.subr.bf16.mxu0 0
        %1251 = vmatpush2.bf16.msra.mxu0 0
        %1252 = vmatprep.subr.bf16.mxu0 0
        %1253 = vmatpush2.bf16.msra.mxu0 0
        %1254 = vmatprep.subr.bf16.mxu0 0
        %1255 = vmatpush2.bf16.msra.mxu0 0
        %1256 = vmatprep.subr.bf16.mxu0 0
        %1257 = vmatpush2.bf16.msra.mxu0 0
        %1258 = vmatprep.subr.bf16.mxu0 0
        %1259 = vmatpush2.bf16.msra.mxu0 0
        %1260 = vmatprep.subr.bf16.mxu0 0
        %1261 = vmatpush2.bf16.msra.mxu0 0
        %1262 = vmatprep.subr.bf16.mxu0 0
        %1263 = vmatpush2.bf16.msra.mxu0 0
        %1264 = vmatprep.subr.bf16.mxu0 0
        %1265 = vmatpush2.bf16.msra.mxu0 0
        %1266 = vmatprep.mubr.bf16.mxu0 0
        %1267 = vmatmul.mubr.bf16.gmra.mxu0 %v980
        %v1268 = vpop.f32.mrf.mxu0
        %v1269 = vadd.f32 %v1181, %v1268
        %v1270 = vpop.f32.mrf.mxu0
        %v1271 = vpop.f32.mrf.mxu0
        %v1272 = vpop.f32.mrf.mxu0
        %1273 = vdwg.mxu0
        %1274 = vmatprep.subr.bf16.mxu0 0
        %1275 = vmatpush1.bf16.msra.mxu0 0
        %1276 = vmatprep.subr.bf16.mxu0 0
        %1277 = vmatpush1.bf16.msra.mxu0 0
        %1278 = vmatprep.subr.bf16.mxu0 0
        %1279 = vmatpush1.bf16.msra.mxu0 0
        %1280 = vmatprep.subr.bf16.mxu0 0
        %1281 = vmatpush1.bf16.msra.mxu0 0
        %1282 = vmatprep.subr.bf16.mxu0 0
        %1283 = vmatpush1.bf16.msra.mxu0 0
        %1284 = vmatprep.subr.bf16.mxu0 0
        %1285 = vmatpush1.bf16.msra.mxu0 0
        %1286 = vmatprep.subr.bf16.mxu0 0
        %1287 = vmatpush1.bf16.msra.mxu0 %v1163
        %1288 = vmatprep.subr.bf16.mxu0 0
        %1289 = vmatpush1.bf16.msra.mxu0 %v1162
        %1290 = vmatprep.subr.bf16.mxu0 0
        %1291 = vmatpush2.bf16.msra.mxu0 0
        %1292 = vmatprep.subr.bf16.mxu0 0
        %1293 = vmatpush2.bf16.msra.mxu0 0
        %1294 = vmatprep.subr.bf16.mxu0 0
        %1295 = vmatpush2.bf16.msra.mxu0 0
        %1296 = vmatprep.subr.bf16.mxu0 0
        %1297 = vmatpush2.bf16.msra.mxu0 0
        %1298 = vmatprep.subr.bf16.mxu0 0
        %1299 = vmatpush2.bf16.msra.mxu0 0
        %1300 = vmatprep.subr.bf16.mxu0 0
        %1301 = vmatpush2.bf16.msra.mxu0 0
        %1302 = vmatprep.subr.bf16.mxu0 0
        %1303 = vmatpush2.bf16.msra.mxu0 0
        %1304 = vmatprep.subr.bf16.mxu0 0
        %1305 = vmatpush2.bf16.msra.mxu0 0
        %1306 = vmatprep.mubr.bf16.mxu0 0
        %1307 = vmatmul.mubr.bf16.gmra.mxu0 %v980
        %v1308 = vpop.f32.mrf.mxu0
        %v1309 = vadd.f32 %v1185, %v1308
        %v1310 = vpop.f32.mrf.mxu0
        %v1311 = vpop.f32.mrf.mxu0
        %v1312 = vpop.f32.mrf.mxu0
        %1313 = vdwg.mxu0
        %1314 = vmatprep.subr.bf16.mxu0 0
        %1315 = vmatpush1.bf16.msra.mxu0 0
        %1316 = vmatprep.subr.bf16.mxu0 0
        %1317 = vmatpush1.bf16.msra.mxu0 0
        %1318 = vmatprep.subr.bf16.mxu0 0
        %1319 = vmatpush1.bf16.msra.mxu0 0
        %1320 = vmatprep.subr.bf16.mxu0 0
        %1321 = vmatpush1.bf16.msra.mxu0 0
        %1322 = vmatprep.subr.bf16.mxu0 0
        %1323 = vmatpush1.bf16.msra.mxu0 0
        %1324 = vmatprep.subr.bf16.mxu0 0
        %1325 = vmatpush1.bf16.msra.mxu0 0
        %1326 = vmatprep.subr.bf16.mxu0 0
        %1327 = vmatpush1.bf16.msra.mxu0 %v1165
        %1328 = vmatprep.subr.bf16.mxu0 0
        %1329 = vmatpush1.bf16.msra.mxu0 %v1164
        %1330 = vmatprep.subr.bf16.mxu0 0
        %1331 = vmatpush2.bf16.msra.mxu0 0
        %1332 = vmatprep.subr.bf16.mxu0 0
        %1333 = vmatpush2.bf16.msra.mxu0 0
        %1334 = vmatprep.subr.bf16.mxu0 0
        %1335 = vmatpush2.bf16.msra.mxu0 0
        %1336 = vmatprep.subr.bf16.mxu0 0
        %1337 = vmatpush2.bf16.msra.mxu0 0
        %1338 = vmatprep.subr.bf16.mxu0 0
        %1339 = vmatpush2.bf16.msra.mxu0 0
        %1340 = vmatprep.subr.bf16.mxu0 0
        %1341 = vmatpush2.bf16.msra.mxu0 0
        %1342 = vmatprep.subr.bf16.mxu0 0
        %1343 = vmatpush2.bf16.msra.mxu0 0
        %1344 = vmatprep.subr.bf16.mxu0 0
        %1345 = vmatpush2.bf16.msra.mxu0 0
        %1346 = vmatprep.mubr.bf16.mxu0 0
        %1347 = vmatmul.mubr.bf16.gmra.mxu0 %v980
        %v1348 = vpop.f32.mrf.mxu0
        %v1349 = vadd.f32 %v1189, %v1348
        %v1350 = vpop.f32.mrf.mxu0
        %v1351 = vpop.f32.mrf.mxu0
        %v1352 = vpop.f32.mrf.mxu0
        %1353 = vdwg.mxu0
        %v1354 = vld [vmem:[%s866] sm:$0xff]
        %v1355 = vld [vmem:[%s866 + $0x8] sm:$0xff]
        %v1356 = vld [vmem:[%s866 + $0x10] sm:$0xff]
        %v1357 = vld [vmem:[%s866 + $0x18] sm:$0xff]
        %v1358 = vld [vmem:[%s866 + $0x20] sm:$0xff]
        %v1359 = vld [vmem:[%s866 + $0x28] sm:$0xff]
        %v1360 = vld [vmem:[%s866 + $0x30] sm:$0xff]
        %v1361 = vld [vmem:[%s866 + $0x38] sm:$0xff]
        %v1362 = vld [vmem:[%s866 + $0x40] sm:$0xff]
        %v1363 = vld [vmem:[%s866 + $0x48] sm:$0xff]
        %v1364 = vld [vmem:[%s866 + $0x50] sm:$0xff]
        %v1365 = vld [vmem:[%s866 + $0x58] sm:$0xff]
        %v1366 = vld [vmem:[%s866 + $0x60] sm:$0xff]
        %v1367 = vld [vmem:[%s866 + $0x68] sm:$0xff]
        %v1368 = vld [vmem:[%s866 + $0x70] sm:$0xff]
        %v1369 = vld [vmem:[%s866 + $0x78] sm:$0xff]
        %v1370 = vpack.c.bf16 %v1355, %v1354
        %v1371 = vpack.c.bf16 %v1357, %v1356
        %v1372 = vpack.c.bf16 %v1359, %v1358
        %v1373 = vpack.c.bf16 %v1361, %v1360
        %v1374 = vpack.c.bf16 %v1363, %v1362
        %v1375 = vpack.c.bf16 %v1365, %v1364
        %v1376 = vpack.c.bf16 %v1367, %v1366
        %v1377 = vpack.c.bf16 %v1369, %v1368
        %v1378 = vld [vmem:[%s870] sm:$0x1]
        %v1379 = vld [vmem:[%s870 + $0x1] sm:$0x1]
        %v1380 = vld [vmem:[%s870 + $0x2] sm:$0x1]
        %v1381 = vld [vmem:[%s870 + $0x3] sm:$0x1]
        %v1386 = vlaneseq
        %v1387 = vshrl.u32 %v1386, 7
        %v1388 = vsub.s32 0, %v1387
        %v1389 = vrot.slane %v1378, %v1388
        %v1390 = vlaneseq
        %v1391 = vshrl.u32 %v1390, 7
        %v1392 = vsub.s32 0, %v1391
        %v1393 = vrot.slane %v1379, %v1392
        %v1394 = vlaneseq
        %v1395 = vshrl.u32 %v1394, 7
        %v1396 = vsub.s32 0, %v1395
        %v1397 = vrot.slane %v1380, %v1396
        %v1398 = vlaneseq
        %v1399 = vshrl.u32 %v1398, 7
        %v1400 = vsub.s32 0, %v1399
        %v1401 = vrot.slane %v1381, %v1400
        %1406 = vmatprep.subr.bf16.mxu0 0
        %1407 = vmatpush1.bf16.msra.mxu0 0
        %1408 = vmatprep.subr.bf16.mxu0 0
        %1409 = vmatpush1.bf16.msra.mxu0 0
        %1410 = vmatprep.subr.bf16.mxu0 0
        %1411 = vmatpush1.bf16.msra.mxu0 0
        %1412 = vmatprep.subr.bf16.mxu0 0
        %1413 = vmatpush1.bf16.msra.mxu0 0
        %1414 = vmatprep.subr.bf16.mxu0 0
        %1415 = vmatpush1.bf16.msra.mxu0 0
        %1416 = vmatprep.subr.bf16.mxu0 0
        %1417 = vmatpush1.bf16.msra.mxu0 0
        %1418 = vmatprep.subr.bf16.mxu0 0
        %1419 = vmatpush1.bf16.msra.mxu0 %v1371
        %1420 = vmatprep.subr.bf16.mxu0 0
        %1421 = vmatpush1.bf16.msra.mxu0 %v1370
        %1422 = vmatprep.subr.bf16.mxu0 0
        %1423 = vmatpush2.bf16.msra.mxu0 0
        %1424 = vmatprep.subr.bf16.mxu0 0
        %1425 = vmatpush2.bf16.msra.mxu0 0
        %1426 = vmatprep.subr.bf16.mxu0 0
        %1427 = vmatpush2.bf16.msra.mxu0 0
        %1428 = vmatprep.subr.bf16.mxu0 0
        %1429 = vmatpush2.bf16.msra.mxu0 0
        %1430 = vmatprep.subr.bf16.mxu0 0
        %1431 = vmatpush2.bf16.msra.mxu0 0
        %1432 = vmatprep.subr.bf16.mxu0 0
        %1433 = vmatpush2.bf16.msra.mxu0 0
        %1434 = vmatprep.subr.bf16.mxu0 0
        %1435 = vmatpush2.bf16.msra.mxu0 0
        %1436 = vmatprep.subr.bf16.mxu0 0
        %1437 = vmatpush2.bf16.msra.mxu0 0
        %1438 = vmatprep.mubr.bf16.mxu0 0
        %1439 = vmatmul.mubr.bf16.gmra.mxu0 %v980
        %v1440 = vpop.f32.mrf.mxu0
        %v1441 = vadd.f32 %v1389, %v1440
        %v1442 = vpop.f32.mrf.mxu0
        %v1443 = vpop.f32.mrf.mxu0
        %v1444 = vpop.f32.mrf.mxu0
        %1445 = vdwg.mxu0
        %1446 = vmatprep.subr.bf16.mxu0 0
        %1447 = vmatpush1.bf16.msra.mxu0 0
        %1448 = vmatprep.subr.bf16.mxu0 0
        %1449 = vmatpush1.bf16.msra.mxu0 0
        %1450 = vmatprep.subr.bf16.mxu0 0
        %1451 = vmatpush1.bf16.msra.mxu0 0
        %1452 = vmatprep.subr.bf16.mxu0 0
        %1453 = vmatpush1.bf16.msra.mxu0 0
        %1454 = vmatprep.subr.bf16.mxu0 0
        %1455 = vmatpush1.bf16.msra.mxu0 0
        %1456 = vmatprep.subr.bf16.mxu0 0
        %1457 = vmatpush1.bf16.msra.mxu0 0
        %1458 = vmatprep.subr.bf16.mxu0 0
        %1459 = vmatpush1.bf16.msra.mxu0 %v1373
        %1460 = vmatprep.subr.bf16.mxu0 0
        %1461 = vmatpush1.bf16.msra.mxu0 %v1372
        %1462 = vmatprep.subr.bf16.mxu0 0
        %1463 = vmatpush2.bf16.msra.mxu0 0
        %1464 = vmatprep.subr.bf16.mxu0 0
        %1465 = vmatpush2.bf16.msra.mxu0 0
        %1466 = vmatprep.subr.bf16.mxu0 0
        %1467 = vmatpush2.bf16.msra.mxu0 0
        %1468 = vmatprep.subr.bf16.mxu0 0
        %1469 = vmatpush2.bf16.msra.mxu0 0
        %1470 = vmatprep.subr.bf16.mxu0 0
        %1471 = vmatpush2.bf16.msra.mxu0 0
        %1472 = vmatprep.subr.bf16.mxu0 0
        %1473 = vmatpush2.bf16.msra.mxu0 0
        %1474 = vmatprep.subr.bf16.mxu0 0
        %1475 = vmatpush2.bf16.msra.mxu0 0
        %1476 = vmatprep.subr.bf16.mxu0 0
        %1477 = vmatpush2.bf16.msra.mxu0 0
        %1478 = vmatprep.mubr.bf16.mxu0 0
        %1479 = vmatmul.mubr.bf16.gmra.mxu0 %v980
        %v1480 = vpop.f32.mrf.mxu0
        %v1481 = vadd.f32 %v1393, %v1480
        %v1482 = vpop.f32.mrf.mxu0
        %v1483 = vpop.f32.mrf.mxu0
        %v1484 = vpop.f32.mrf.mxu0
        %1485 = vdwg.mxu0
        %1486 = vmatprep.subr.bf16.mxu0 0
        %1487 = vmatpush1.bf16.msra.mxu0 0
        %1488 = vmatprep.subr.bf16.mxu0 0
        %1489 = vmatpush1.bf16.msra.mxu0 0
        %1490 = vmatprep.subr.bf16.mxu0 0
        %1491 = vmatpush1.bf16.msra.mxu0 0
        %1492 = vmatprep.subr.bf16.mxu0 0
        %1493 = vmatpush1.bf16.msra.mxu0 0
        %1494 = vmatprep.subr.bf16.mxu0 0
        %1495 = vmatpush1.bf16.msra.mxu0 0
        %1496 = vmatprep.subr.bf16.mxu0 0
        %1497 = vmatpush1.bf16.msra.mxu0 0
        %1498 = vmatprep.subr.bf16.mxu0 0
        %1499 = vmatpush1.bf16.msra.mxu0 %v1375
        %1500 = vmatprep.subr.bf16.mxu0 0
        %1501 = vmatpush1.bf16.msra.mxu0 %v1374
        %1502 = vmatprep.subr.bf16.mxu0 0
        %1503 = vmatpush2.bf16.msra.mxu0 0
        %1504 = vmatprep.subr.bf16.mxu0 0
        %1505 = vmatpush2.bf16.msra.mxu0 0
        %1506 = vmatprep.subr.bf16.mxu0 0
        %1507 = vmatpush2.bf16.msra.mxu0 0
        %1508 = vmatprep.subr.bf16.mxu0 0
        %1509 = vmatpush2.bf16.msra.mxu0 0
        %1510 = vmatprep.subr.bf16.mxu0 0
        %1511 = vmatpush2.bf16.msra.mxu0 0
        %1512 = vmatprep.subr.bf16.mxu0 0
        %1513 = vmatpush2.bf16.msra.mxu0 0
        %1514 = vmatprep.subr.bf16.mxu0 0
        %1515 = vmatpush2.bf16.msra.mxu0 0
        %1516 = vmatprep.subr.bf16.mxu0 0
        %1517 = vmatpush2.bf16.msra.mxu0 0
        %1518 = vmatprep.mubr.bf16.mxu0 0
        %1519 = vmatmul.mubr.bf16.gmra.mxu0 %v980
        %v1520 = vpop.f32.mrf.mxu0
        %v1521 = vadd.f32 %v1397, %v1520
        %v1522 = vpop.f32.mrf.mxu0
        %v1523 = vpop.f32.mrf.mxu0
        %v1524 = vpop.f32.mrf.mxu0
        %1525 = vdwg.mxu0
        %1526 = vmatprep.subr.bf16.mxu0 0
        %1527 = vmatpush1.bf16.msra.mxu0 0
        %1528 = vmatprep.subr.bf16.mxu0 0
        %1529 = vmatpush1.bf16.msra.mxu0 0
        %1530 = vmatprep.subr.bf16.mxu0 0
        %1531 = vmatpush1.bf16.msra.mxu0 0
        %1532 = vmatprep.subr.bf16.mxu0 0
        %1533 = vmatpush1.bf16.msra.mxu0 0
        %1534 = vmatprep.subr.bf16.mxu0 0
        %1535 = vmatpush1.bf16.msra.mxu0 0
        %1536 = vmatprep.subr.bf16.mxu0 0
        %1537 = vmatpush1.bf16.msra.mxu0 0
        %1538 = vmatprep.subr.bf16.mxu0 0
        %1539 = vmatpush1.bf16.msra.mxu0 %v1377
        %1540 = vmatprep.subr.bf16.mxu0 0
        %1541 = vmatpush1.bf16.msra.mxu0 %v1376
        %1542 = vmatprep.subr.bf16.mxu0 0
        %1543 = vmatpush2.bf16.msra.mxu0 0
        %1544 = vmatprep.subr.bf16.mxu0 0
        %1545 = vmatpush2.bf16.msra.mxu0 0
        %1546 = vmatprep.subr.bf16.mxu0 0
        %1547 = vmatpush2.bf16.msra.mxu0 0
        %1548 = vmatprep.subr.bf16.mxu0 0
        %1549 = vmatpush2.bf16.msra.mxu0 0
        %1550 = vmatprep.subr.bf16.mxu0 0
        %1551 = vmatpush2.bf16.msra.mxu0 0
        %1552 = vmatprep.subr.bf16.mxu0 0
        %1553 = vmatpush2.bf16.msra.mxu0 0
        %1554 = vmatprep.subr.bf16.mxu0 0
        %1555 = vmatpush2.bf16.msra.mxu0 0
        %1556 = vmatprep.subr.bf16.mxu0 0
        %1557 = vmatpush2.bf16.msra.mxu0 0
        %1558 = vmatprep.mubr.bf16.mxu0 0
        %1559 = vmatmul.mubr.bf16.gmra.mxu0 %v980
        %v1560 = vpop.f32.mrf.mxu0
        %v1561 = vadd.f32 %v1401, %v1560
        %v1562 = vpop.f32.mrf.mxu0
        %v1563 = vpop.f32.mrf.mxu0
        %v1564 = vpop.f32.mrf.mxu0
        %1565 = vdwg.mxu0
        %v1566 = vpack.c.bf16 %v1017, %v1017
        %v1567 = vpack.c.bf16 %v1057, %v1057
        %v1568 = vpack.c.bf16 %v1097, %v1097
        %v1569 = vpack.c.bf16 %v1137, %v1137
        %v1570 = vpack.c.bf16 %v1229, %v1229
        %v1571 = vpack.c.bf16 %v1269, %v1269
        %v1572 = vpack.c.bf16 %v1309, %v1309
        %v1573 = vpack.c.bf16 %v1349, %v1349
        %v1574 = vld [vmem:[%s843] sm:$0x1]
        %v1576 = vlaneseq
        %v1577 = vshrl.u32 %v1576, 7
        %v1578 = vsub.s32 0, %v1577
        %v1579 = vrot.slane %v1574, %v1578
        %vm1581 = vcmask 130048
        %v1583 = vsel %vm1581, %v1566, 0
        %v1586 = vsel %vm1581, %v1570, 0
        %1588 = vmatprep.subr.bf16.mxu0 0
        %1589 = vmatpush1.bf16.xpose.msra.mxu0 0
        %1590 = vmatprep.subr.bf16.mxu0 0
        %1591 = vmatpush1.bf16.xpose.msra.mxu0 0
        %1592 = vmatprep.subr.bf16.mxu0 0
        %1593 = vmatpush1.bf16.xpose.msra.mxu0 0
        %1594 = vmatprep.subr.bf16.mxu0 0
        %1595 = vmatpush1.bf16.xpose.msra.mxu0 0
        %1596 = vmatprep.subr.bf16.mxu0 0
        %1597 = vmatpush1.bf16.xpose.msra.mxu0 0
        %1598 = vmatprep.subr.bf16.mxu0 0
        %1599 = vmatpush1.bf16.xpose.msra.mxu0 0
        %1600 = vmatprep.subr.bf16.mxu0 0
        %1601 = vmatpush1.bf16.xpose.msra.mxu0 0
        %1602 = vmatprep.subr.bf16.mxu0 0
        %1603 = vmatpush1.bf16.xpose.msra.mxu0 %v1586
        %1604 = vmatprep.subr.bf16.mxu0 0
        %1605 = vmatpush2.bf16.xpose.msra.mxu0 0
        %1606 = vmatprep.subr.bf16.mxu0 0
        %1607 = vmatpush2.bf16.xpose.msra.mxu0 0
        %1608 = vmatprep.subr.bf16.mxu0 0
        %1609 = vmatpush2.bf16.xpose.msra.mxu0 0
        %1610 = vmatprep.subr.bf16.mxu0 0
        %1611 = vmatpush2.bf16.xpose.msra.mxu0 0
        %1612 = vmatprep.subr.bf16.mxu0 0
        %1613 = vmatpush2.bf16.xpose.msra.mxu0 0
        %1614 = vmatprep.subr.bf16.mxu0 0
        %1615 = vmatpush2.bf16.xpose.msra.mxu0 0
        %1616 = vmatprep.subr.bf16.mxu0 0
        %1617 = vmatpush2.bf16.xpose.msra.mxu0 0
        %1618 = vmatprep.subr.bf16.mxu0 0
        %1619 = vmatpush2.bf16.xpose.msra.mxu0 0
        %1620 = vmatprep.mubr.bf16.mxu0 0
        %1621 = vmatmul.mubr.bf16.gmra.mxu0 %v1583
        %v1622 = vpop.f32.mrf.mxu0
        %v1623 = vadd.f32 %v1579, %v1622
        %v1624 = vpop.f32.mrf.mxu0
        %v1625 = vpop.f32.mrf.mxu0
        %v1626 = vpop.f32.mrf.mxu0
        %1627 = vdwg.mxu0
        %v1629 = vsel %vm1581, %v1567, 0
        %v1632 = vsel %vm1581, %v1571, 0
        %1634 = vmatprep.subr.bf16.mxu0 0
        %1635 = vmatpush1.bf16.xpose.msra.mxu0 0
        %1636 = vmatprep.subr.bf16.mxu0 0
        %1637 = vmatpush1.bf16.xpose.msra.mxu0 0
        %1638 = vmatprep.subr.bf16.mxu0 0
        %1639 = vmatpush1.bf16.xpose.msra.mxu0 0
        %1640 = vmatprep.subr.bf16.mxu0 0
        %1641 = vmatpush1.bf16.xpose.msra.mxu0 0
        %1642 = vmatprep.subr.bf16.mxu0 0
        %1643 = vmatpush1.bf16.xpose.msra.mxu0 0
        %1644 = vmatprep.subr.bf16.mxu0 0
        %1645 = vmatpush1.bf16.xpose.msra.mxu0 0
        %1646 = vmatprep.subr.bf16.mxu0 0
        %1647 = vmatpush1.bf16.xpose.msra.mxu0 0
        %1648 = vmatprep.subr.bf16.mxu0 0
        %1649 = vmatpush1.bf16.xpose.msra.mxu0 %v1632
        %1650 = vmatprep.subr.bf16.mxu0 0
        %1651 = vmatpush2.bf16.xpose.msra.mxu0 0
        %1652 = vmatprep.subr.bf16.mxu0 0
        %1653 = vmatpush2.bf16.xpose.msra.mxu0 0
        %1654 = vmatprep.subr.bf16.mxu0 0
        %1655 = vmatpush2.bf16.xpose.msra.mxu0 0
        %1656 = vmatprep.subr.bf16.mxu0 0
        %1657 = vmatpush2.bf16.xpose.msra.mxu0 0
        %1658 = vmatprep.subr.bf16.mxu0 0
        %1659 = vmatpush2.bf16.xpose.msra.mxu0 0
        %1660 = vmatprep.subr.bf16.mxu0 0
        %1661 = vmatpush2.bf16.xpose.msra.mxu0 0
        %1662 = vmatprep.subr.bf16.mxu0 0
        %1663 = vmatpush2.bf16.xpose.msra.mxu0 0
        %1664 = vmatprep.subr.bf16.mxu0 0
        %1665 = vmatpush2.bf16.xpose.msra.mxu0 0
        %1666 = vmatprep.mubr.bf16.mxu0 0
        %1667 = vmatmul.mubr.bf16.gmra.mxu0 %v1629
        %v1668 = vpop.f32.mrf.mxu0
        %v1669 = vadd.f32 %v1579, %v1668
        %v1670 = vpop.f32.mrf.mxu0
        %v1671 = vpop.f32.mrf.mxu0
        %v1672 = vpop.f32.mrf.mxu0
        %1673 = vdwg.mxu0
        %v1675 = vsel %vm1581, %v1568, 0
        %v1678 = vsel %vm1581, %v1572, 0
        %1680 = vmatprep.subr.bf16.mxu0 0
        %1681 = vmatpush1.bf16.xpose.msra.mxu0 0
        %1682 = vmatprep.subr.bf16.mxu0 0
        %1683 = vmatpush1.bf16.xpose.msra.mxu0 0
        %1684 = vmatprep.subr.bf16.mxu0 0
        %1685 = vmatpush1.bf16.xpose.msra.mxu0 0
        %1686 = vmatprep.subr.bf16.mxu0 0
        %1687 = vmatpush1.bf16.xpose.msra.mxu0 0
        %1688 = vmatprep.subr.bf16.mxu0 0
        %1689 = vmatpush1.bf16.xpose.msra.mxu0 0
        %1690 = vmatprep.subr.bf16.mxu0 0
        %1691 = vmatpush1.bf16.xpose.msra.mxu0 0
        %1692 = vmatprep.subr.bf16.mxu0 0
        %1693 = vmatpush1.bf16.xpose.msra.mxu0 0
        %1694 = vmatprep.subr.bf16.mxu0 0
        %1695 = vmatpush1.bf16.xpose.msra.mxu0 %v1678
        %1696 = vmatprep.subr.bf16.mxu0 0
        %1697 = vmatpush2.bf16.xpose.msra.mxu0 0
        %1698 = vmatprep.subr.bf16.mxu0 0
        %1699 = vmatpush2.bf16.xpose.msra.mxu0 0
        %1700 = vmatprep.subr.bf16.mxu0 0
        %1701 = vmatpush2.bf16.xpose.msra.mxu0 0
        %1702 = vmatprep.subr.bf16.mxu0 0
        %1703 = vmatpush2.bf16.xpose.msra.mxu0 0
        %1704 = vmatprep.subr.bf16.mxu0 0
        %1705 = vmatpush2.bf16.xpose.msra.mxu0 0
        %1706 = vmatprep.subr.bf16.mxu0 0
        %1707 = vmatpush2.bf16.xpose.msra.mxu0 0
        %1708 = vmatprep.subr.bf16.mxu0 0
        %1709 = vmatpush2.bf16.xpose.msra.mxu0 0
        %1710 = vmatprep.subr.bf16.mxu0 0
        %1711 = vmatpush2.bf16.xpose.msra.mxu0 0
        %1712 = vmatprep.mubr.bf16.mxu0 0
        %1713 = vmatmul.mubr.bf16.gmra.mxu0 %v1675
        %v1714 = vpop.f32.mrf.mxu0
        %v1715 = vadd.f32 %v1579, %v1714
        %v1716 = vpop.f32.mrf.mxu0
        %v1717 = vpop.f32.mrf.mxu0
        %v1718 = vpop.f32.mrf.mxu0
        %1719 = vdwg.mxu0
        %v1721 = vsel %vm1581, %v1569, 0
        %v1724 = vsel %vm1581, %v1573, 0
        %1726 = vmatprep.subr.bf16.mxu0 0
        %1727 = vmatpush1.bf16.xpose.msra.mxu0 0
        %1728 = vmatprep.subr.bf16.mxu0 0
        %1729 = vmatpush1.bf16.xpose.msra.mxu0 0
        %1730 = vmatprep.subr.bf16.mxu0 0
        %1731 = vmatpush1.bf16.xpose.msra.mxu0 0
        %1732 = vmatprep.subr.bf16.mxu0 0
        %1733 = vmatpush1.bf16.xpose.msra.mxu0 0
        %1734 = vmatprep.subr.bf16.mxu0 0
        %1735 = vmatpush1.bf16.xpose.msra.mxu0 0
        %1736 = vmatprep.subr.bf16.mxu0 0
        %1737 = vmatpush1.bf16.xpose.msra.mxu0 0
        %1738 = vmatprep.subr.bf16.mxu0 0
        %1739 = vmatpush1.bf16.xpose.msra.mxu0 0
        %1740 = vmatprep.subr.bf16.mxu0 0
        %1741 = vmatpush1.bf16.xpose.msra.mxu0 %v1724
        %1742 = vmatprep.subr.bf16.mxu0 0
        %1743 = vmatpush2.bf16.xpose.msra.mxu0 0
        %1744 = vmatprep.subr.bf16.mxu0 0
        %1745 = vmatpush2.bf16.xpose.msra.mxu0 0
        %1746 = vmatprep.subr.bf16.mxu0 0
        %1747 = vmatpush2.bf16.xpose.msra.mxu0 0
        %1748 = vmatprep.subr.bf16.mxu0 0
        %1749 = vmatpush2.bf16.xpose.msra.mxu0 0
        %1750 = vmatprep.subr.bf16.mxu0 0
        %1751 = vmatpush2.bf16.xpose.msra.mxu0 0
        %1752 = vmatprep.subr.bf16.mxu0 0
        %1753 = vmatpush2.bf16.xpose.msra.mxu0 0
        %1754 = vmatprep.subr.bf16.mxu0 0
        %1755 = vmatpush2.bf16.xpose.msra.mxu0 0
        %1756 = vmatprep.subr.bf16.mxu0 0
        %1757 = vmatpush2.bf16.xpose.msra.mxu0 0
        %1758 = vmatprep.mubr.bf16.mxu0 0
        %1759 = vmatmul.mubr.bf16.gmra.mxu0 %v1721
        %v1760 = vpop.f32.mrf.mxu0
        %v1761 = vadd.f32 %v1579, %v1760
        %v1762 = vpop.f32.mrf.mxu0
        %v1763 = vpop.f32.mrf.mxu0
        %v1764 = vpop.f32.mrf.mxu0
        %1765 = vdwg.mxu0
        %vm1766 = vcmask 64512
        %v1767 = vsel %vm1766, %v1623, -inf
        %1768 = vmax.xlane.f32.xlu0 %v1767
        %v1769 = vpop.xlane.xlu0 %1768
        %v1770 = vsel %vm1766, %v1669, -inf
        %1771 = vmax.xlane.f32.xlu0 %v1770
        %v1772 = vpop.xlane.xlu0 %1771
        %v1773 = vsel %vm1766, %v1715, -inf
        %1774 = vmax.xlane.f32.xlu0 %v1773
        %v1775 = vpop.xlane.xlu0 %1774
        %v1776 = vsel %vm1766, %v1761, -inf
        %1777 = vmax.xlane.f32.xlu0 %v1776
        %v1778 = vpop.xlane.xlu0 %1777
        %v1779 = vsub.f32 %v1623, %v1769
        %v1780 = vsub.f32 %v1669, %v1772
        %v1781 = vsub.f32 %v1715, %v1775
        %v1782 = vsub.f32 %v1761, %v1778
        %v1783 = vmul.f32 %v1779, 1.442695
        %v1784 = vpow.pop %v1783
        %v1785 = vmul.f32 %v1780, 1.442695
        %v1786 = vpow.pop %v1785
        %v1787 = vmul.f32 %v1781, 1.442695
        %v1788 = vpow.pop %v1787
        %v1789 = vmul.f32 %v1782, 1.442695
        %v1790 = vpow.pop %v1789
        %v1791 = vsel %vm1766, %v1784, 0.0
        %1792 = vadd.xlane.f32.xlu0 %v1791
        %v1793 = vpop.xlane.xlu0 %1792
        %v1794 = vsel %vm1766, %v1786, 0.0
        %1795 = vadd.xlane.f32.xlu0 %v1794
        %v1796 = vpop.xlane.xlu0 %1795
        %v1797 = vsel %vm1766, %v1788, 0.0
        %1798 = vadd.xlane.f32.xlu0 %v1797
        %v1799 = vpop.xlane.xlu0 %1798
        %v1800 = vsel %vm1766, %v1790, 0.0
        %1801 = vadd.xlane.f32.xlu0 %v1800
        %v1802 = vpop.xlane.xlu0 %1801
        %v1803 = vrcp.pop %v1793
        %v1804 = vmul.f32 %v1784, %v1803
        %v1805 = vrcp.pop %v1796
        %v1806 = vmul.f32 %v1786, %v1805
        %v1807 = vrcp.pop %v1799
        %v1808 = vmul.f32 %v1788, %v1807
        %v1809 = vrcp.pop %v1802
        %v1810 = vmul.f32 %v1790, %v1809
        %1811 = vst.msk [vmem:[%s915] sm:$0xff] %vm1766, %v1804
        %1812 = vst.msk [vmem:[%s915 + $0x8] sm:$0xff] %vm1766, %v1806
        %1813 = vst.msk [vmem:[%s915 + $0x10] sm:$0xff] %vm1766, %v1808
        %1814 = vst.msk [vmem:[%s915 + $0x18] sm:$0xff] %vm1766, %v1810
        %v1815 = vpack.c.bf16 %v1804, %v1804
        %v1816 = vpack.c.bf16 %v1806, %v1806
        %v1817 = vpack.c.bf16 %v1808, %v1808
        %v1818 = vpack.c.bf16 %v1810, %v1810
        %v1819 = vpack.c.bf16 %v1441, %v1441
        %v1820 = vpack.c.bf16 %v1481, %v1481
        %v1821 = vpack.c.bf16 %v1521, %v1521
        %v1822 = vpack.c.bf16 %v1561, %v1561
        %v1824 = vsel %vm1766, %v1815, 0
        %vm1826 = vcmask 1043456
        %v1828 = vsel %vm1826, %v1819, 0
        %1830 = vmatprep.subr.bf16.mxu0 0
        %1831 = vmatpush1.bf16.msra.mxu0 0
        %1832 = vmatprep.subr.bf16.mxu0 0
        %1833 = vmatpush1.bf16.msra.mxu0 0
        %1834 = vmatprep.subr.bf16.mxu0 0
        %1835 = vmatpush1.bf16.msra.mxu0 0
        %1836 = vmatprep.subr.bf16.mxu0 0
        %1837 = vmatpush1.bf16.msra.mxu0 0
        %1838 = vmatprep.subr.bf16.mxu0 0
        %1839 = vmatpush1.bf16.msra.mxu0 0
        %1840 = vmatprep.subr.bf16.mxu0 0
        %1841 = vmatpush1.bf16.msra.mxu0 0
        %1842 = vmatprep.subr.bf16.mxu0 0
        %1843 = vmatpush1.bf16.msra.mxu0 0
        %1844 = vmatprep.subr.bf16.mxu0 0
        %1845 = vmatpush1.bf16.msra.mxu0 %v1828
        %1846 = vmatprep.subr.bf16.mxu0 0
        %1847 = vmatpush2.bf16.msra.mxu0 0
        %1848 = vmatprep.subr.bf16.mxu0 0
        %1849 = vmatpush2.bf16.msra.mxu0 0
        %1850 = vmatprep.subr.bf16.mxu0 0
        %1851 = vmatpush2.bf16.msra.mxu0 0
        %1852 = vmatprep.subr.bf16.mxu0 0
        %1853 = vmatpush2.bf16.msra.mxu0 0
        %1854 = vmatprep.subr.bf16.mxu0 0
        %1855 = vmatpush2.bf16.msra.mxu0 0
        %1856 = vmatprep.subr.bf16.mxu0 0
        %1857 = vmatpush2.bf16.msra.mxu0 0
        %1858 = vmatprep.subr.bf16.mxu0 0
        %1859 = vmatpush2.bf16.msra.mxu0 0
        %1860 = vmatprep.subr.bf16.mxu0 0
        %1861 = vmatpush2.bf16.msra.mxu0 0
        %1862 = vmatprep.mubr.bf16.mxu0 0
        %1863 = vmatmul.mubr.bf16.gmra.mxu0 %v1824
        %v1864 = vpop.f32.mrf.mxu0
        %v1865 = vadd.f32 0.0, %v1864
        %v1866 = vpop.f32.mrf.mxu0
        %v1867 = vpop.f32.mrf.mxu0
        %v1868 = vpop.f32.mrf.mxu0
        %1869 = vdwg.mxu0
        %v1871 = vsel %vm1766, %v1816, 0
        %v1874 = vsel %vm1826, %v1820, 0
        %1876 = vmatprep.subr.bf16.mxu0 0
        %1877 = vmatpush1.bf16.msra.mxu0 0
        %1878 = vmatprep.subr.bf16.mxu0 0
        %1879 = vmatpush1.bf16.msra.mxu0 0
        %1880 = vmatprep.subr.bf16.mxu0 0
        %1881 = vmatpush1.bf16.msra.mxu0 0
        %1882 = vmatprep.subr.bf16.mxu0 0
        %1883 = vmatpush1.bf16.msra.mxu0 0
        %1884 = vmatprep.subr.bf16.mxu0 0
        %1885 = vmatpush1.bf16.msra.mxu0 0
        %1886 = vmatprep.subr.bf16.mxu0 0
        %1887 = vmatpush1.bf16.msra.mxu0 0
        %1888 = vmatprep.subr.bf16.mxu0 0
        %1889 = vmatpush1.bf16.msra.mxu0 0
        %1890 = vmatprep.subr.bf16.mxu0 0
        %1891 = vmatpush1.bf16.msra.mxu0 %v1874
        %1892 = vmatprep.subr.bf16.mxu0 0
        %1893 = vmatpush2.bf16.msra.mxu0 0
        %1894 = vmatprep.subr.bf16.mxu0 0
        %1895 = vmatpush2.bf16.msra.mxu0 0
        %1896 = vmatprep.subr.bf16.mxu0 0
        %1897 = vmatpush2.bf16.msra.mxu0 0
        %1898 = vmatprep.subr.bf16.mxu0 0
        %1899 = vmatpush2.bf16.msra.mxu0 0
        %1900 = vmatprep.subr.bf16.mxu0 0
        %1901 = vmatpush2.bf16.msra.mxu0 0
        %1902 = vmatprep.subr.bf16.mxu0 0
        %1903 = vmatpush2.bf16.msra.mxu0 0
        %1904 = vmatprep.subr.bf16.mxu0 0
        %1905 = vmatpush2.bf16.msra.mxu0 0
        %1906 = vmatprep.subr.bf16.mxu0 0
        %1907 = vmatpush2.bf16.msra.mxu0 0
        %1908 = vmatprep.mubr.bf16.mxu0 0
        %1909 = vmatmul.mubr.bf16.gmra.mxu0 %v1871
        %v1910 = vpop.f32.mrf.mxu0
        %v1911 = vadd.f32 0.0, %v1910
        %v1912 = vpop.f32.mrf.mxu0
        %v1913 = vpop.f32.mrf.mxu0
        %v1914 = vpop.f32.mrf.mxu0
        %1915 = vdwg.mxu0
        %v1917 = vsel %vm1766, %v1817, 0
        %v1920 = vsel %vm1826, %v1821, 0
        %1922 = vmatprep.subr.bf16.mxu0 0
        %1923 = vmatpush1.bf16.msra.mxu0 0
        %1924 = vmatprep.subr.bf16.mxu0 0
        %1925 = vmatpush1.bf16.msra.mxu0 0
        %1926 = vmatprep.subr.bf16.mxu0 0
        %1927 = vmatpush1.bf16.msra.mxu0 0
        %1928 = vmatprep.subr.bf16.mxu0 0
        %1929 = vmatpush1.bf16.msra.mxu0 0
        %1930 = vmatprep.subr.bf16.mxu0 0
        %1931 = vmatpush1.bf16.msra.mxu0 0
        %1932 = vmatprep.subr.bf16.mxu0 0
        %1933 = vmatpush1.bf16.msra.mxu0 0
        %1934 = vmatprep.subr.bf16.mxu0 0
        %1935 = vmatpush1.bf16.msra.mxu0 0
        %1936 = vmatprep.subr.bf16.mxu0 0
        %1937 = vmatpush1.bf16.msra.mxu0 %v1920
        %1938 = vmatprep.subr.bf16.mxu0 0
        %1939 = vmatpush2.bf16.msra.mxu0 0
        %1940 = vmatprep.subr.bf16.mxu0 0
        %1941 = vmatpush2.bf16.msra.mxu0 0
        %1942 = vmatprep.subr.bf16.mxu0 0
        %1943 = vmatpush2.bf16.msra.mxu0 0
        %1944 = vmatprep.subr.bf16.mxu0 0
        %1945 = vmatpush2.bf16.msra.mxu0 0
        %1946 = vmatprep.subr.bf16.mxu0 0
        %1947 = vmatpush2.bf16.msra.mxu0 0
        %1948 = vmatprep.subr.bf16.mxu0 0
        %1949 = vmatpush2.bf16.msra.mxu0 0
        %1950 = vmatprep.subr.bf16.mxu0 0
        %1951 = vmatpush2.bf16.msra.mxu0 0
        %1952 = vmatprep.subr.bf16.mxu0 0
        %1953 = vmatpush2.bf16.msra.mxu0 0
        %1954 = vmatprep.mubr.bf16.mxu0 0
        %1955 = vmatmul.mubr.bf16.gmra.mxu0 %v1917
        %v1956 = vpop.f32.mrf.mxu0
        %v1957 = vadd.f32 0.0, %v1956
        %v1958 = vpop.f32.mrf.mxu0
        %v1959 = vpop.f32.mrf.mxu0
        %v1960 = vpop.f32.mrf.mxu0
        %1961 = vdwg.mxu0
        %v1963 = vsel %vm1766, %v1818, 0
        %v1966 = vsel %vm1826, %v1822, 0
        %1968 = vmatprep.subr.bf16.mxu0 0
        %1969 = vmatpush1.bf16.msra.mxu0 0
        %1970 = vmatprep.subr.bf16.mxu0 0
        %1971 = vmatpush1.bf16.msra.mxu0 0
        %1972 = vmatprep.subr.bf16.mxu0 0
        %1973 = vmatpush1.bf16.msra.mxu0 0
        %1974 = vmatprep.subr.bf16.mxu0 0
        %1975 = vmatpush1.bf16.msra.mxu0 0
        %1976 = vmatprep.subr.bf16.mxu0 0
        %1977 = vmatpush1.bf16.msra.mxu0 0
        %1978 = vmatprep.subr.bf16.mxu0 0
        %1979 = vmatpush1.bf16.msra.mxu0 0
        %1980 = vmatprep.subr.bf16.mxu0 0
        %1981 = vmatpush1.bf16.msra.mxu0 0
        %1982 = vmatprep.subr.bf16.mxu0 0
        %1983 = vmatpush1.bf16.msra.mxu0 %v1966
        %1984 = vmatprep.subr.bf16.mxu0 0
        %1985 = vmatpush2.bf16.msra.mxu0 0
        %1986 = vmatprep.subr.bf16.mxu0 0
        %1987 = vmatpush2.bf16.msra.mxu0 0
        %1988 = vmatprep.subr.bf16.mxu0 0
        %1989 = vmatpush2.bf16.msra.mxu0 0
        %1990 = vmatprep.subr.bf16.mxu0 0
        %1991 = vmatpush2.bf16.msra.mxu0 0
        %1992 = vmatprep.subr.bf16.mxu0 0
        %1993 = vmatpush2.bf16.msra.mxu0 0
        %1994 = vmatprep.subr.bf16.mxu0 0
        %1995 = vmatpush2.bf16.msra.mxu0 0
        %1996 = vmatprep.subr.bf16.mxu0 0
        %1997 = vmatpush2.bf16.msra.mxu0 0
        %1998 = vmatprep.subr.bf16.mxu0 0
        %1999 = vmatpush2.bf16.msra.mxu0 0
        %2000 = vmatprep.mubr.bf16.mxu0 0
        %2001 = vmatmul.mubr.bf16.gmra.mxu0 %v1963
        %v2002 = vpop.f32.mrf.mxu0
        %v2003 = vadd.f32 0.0, %v2002
        %v2004 = vpop.f32.mrf.mxu0
        %v2005 = vpop.f32.mrf.mxu0
        %v2006 = vpop.f32.mrf.mxu0
        %2007 = vdwg.mxu0
        %v2008 = vpack.c.bf16 %v1865, %v1865
        %v2009 = vpack.c.bf16 %v1911, %v1911
        %v2010 = vpack.c.bf16 %v1957, %v1957
        %v2011 = vpack.c.bf16 %v2003, %v2003
        %v2012 = vld [vmem:[%s875] sm:$0xff]
        %v2013 = vld [vmem:[%s875 + $0x8] sm:$0xff]
        %v2014 = vld [vmem:[%s875 + $0x10] sm:$0xff]
        %v2015 = vld [vmem:[%s875 + $0x18] sm:$0xff]
        %v2016 = vld [vmem:[%s875 + $0x20] sm:$0xff]
        %v2017 = vld [vmem:[%s875 + $0x28] sm:$0xff]
        %v2018 = vld [vmem:[%s875 + $0x30] sm:$0xff]
        %v2019 = vld [vmem:[%s875 + $0x38] sm:$0xff]
        %v2020 = vpack.c.bf16 %v2013, %v2012
        %v2021 = vpack.c.bf16 %v2015, %v2014
        %v2022 = vpack.c.bf16 %v2017, %v2016
        %v2023 = vpack.c.bf16 %v2019, %v2018
        %v2025 = vsel %vm1581, %v2008, 0
        %2027 = vmatprep.subr.bf16.mxu0 0
        %2028 = vmatpush1.bf16.msra.mxu0 0
        %2029 = vmatprep.subr.bf16.mxu0 0
        %2030 = vmatpush1.bf16.msra.mxu0 0
        %2031 = vmatprep.subr.bf16.mxu0 0
        %2032 = vmatpush1.bf16.msra.mxu0 0
        %2033 = vmatprep.subr.bf16.mxu0 0
        %2034 = vmatpush1.bf16.msra.mxu0 0
        %2035 = vmatprep.subr.bf16.mxu0 0
        %2036 = vmatpush1.bf16.msra.mxu0 0
        %2037 = vmatprep.subr.bf16.mxu0 0
        %2038 = vmatpush1.bf16.msra.mxu0 0
        %2039 = vmatprep.subr.bf16.mxu0 0
        %2040 = vmatpush1.bf16.msra.mxu0 0
        %2041 = vmatprep.subr.bf16.mxu0 0
        %2042 = vmatpush1.bf16.msra.mxu0 %v2020
        %2043 = vmatprep.subr.bf16.mxu0 0
        %2044 = vmatpush2.bf16.msra.mxu0 0
        %2045 = vmatprep.subr.bf16.mxu0 0
        %2046 = vmatpush2.bf16.msra.mxu0 0
        %2047 = vmatprep.subr.bf16.mxu0 0
        %2048 = vmatpush2.bf16.msra.mxu0 0
        %2049 = vmatprep.subr.bf16.mxu0 0
        %2050 = vmatpush2.bf16.msra.mxu0 0
        %2051 = vmatprep.subr.bf16.mxu0 0
        %2052 = vmatpush2.bf16.msra.mxu0 0
        %2053 = vmatprep.subr.bf16.mxu0 0
        %2054 = vmatpush2.bf16.msra.mxu0 0
        %2055 = vmatprep.subr.bf16.mxu0 0
        %2056 = vmatpush2.bf16.msra.mxu0 0
        %2057 = vmatprep.subr.bf16.mxu0 0
        %2058 = vmatpush2.bf16.msra.mxu0 0
        %2059 = vmatprep.mubr.bf16.mxu0 0
        %2060 = vmatmul.mubr.bf16.gmra.mxu0 %v2025
        %v2061 = vpop.f32.mrf.mxu0
        %v2062 = vadd.f32 0.0, %v2061
        %v2063 = vpop.f32.mrf.mxu0
        %v2064 = vpop.f32.mrf.mxu0
        %v2065 = vpop.f32.mrf.mxu0
        %2066 = vdwg.mxu0
        %v2068 = vsel %vm1581, %v2009, 0
        %2070 = vmatprep.subr.bf16.mxu0 0
        %2071 = vmatpush1.bf16.msra.mxu0 0
        %2072 = vmatprep.subr.bf16.mxu0 0
        %2073 = vmatpush1.bf16.msra.mxu0 0
        %2074 = vmatprep.subr.bf16.mxu0 0
        %2075 = vmatpush1.bf16.msra.mxu0 0
        %2076 = vmatprep.subr.bf16.mxu0 0
        %2077 = vmatpush1.bf16.msra.mxu0 0
        %2078 = vmatprep.subr.bf16.mxu0 0
        %2079 = vmatpush1.bf16.msra.mxu0 0
        %2080 = vmatprep.subr.bf16.mxu0 0
        %2081 = vmatpush1.bf16.msra.mxu0 0
        %2082 = vmatprep.subr.bf16.mxu0 0
        %2083 = vmatpush1.bf16.msra.mxu0 0
        %2084 = vmatprep.subr.bf16.mxu0 0
        %2085 = vmatpush1.bf16.msra.mxu0 %v2021
        %2086 = vmatprep.subr.bf16.mxu0 0
        %2087 = vmatpush2.bf16.msra.mxu0 0
        %2088 = vmatprep.subr.bf16.mxu0 0
        %2089 = vmatpush2.bf16.msra.mxu0 0
        %2090 = vmatprep.subr.bf16.mxu0 0
        %2091 = vmatpush2.bf16.msra.mxu0 0
        %2092 = vmatprep.subr.bf16.mxu0 0
        %2093 = vmatpush2.bf16.msra.mxu0 0
        %2094 = vmatprep.subr.bf16.mxu0 0
        %2095 = vmatpush2.bf16.msra.mxu0 0
        %2096 = vmatprep.subr.bf16.mxu0 0
        %2097 = vmatpush2.bf16.msra.mxu0 0
        %2098 = vmatprep.subr.bf16.mxu0 0
        %2099 = vmatpush2.bf16.msra.mxu0 0
        %2100 = vmatprep.subr.bf16.mxu0 0
        %2101 = vmatpush2.bf16.msra.mxu0 0
        %2102 = vmatprep.mubr.bf16.mxu0 0
        %2103 = vmatmul.mubr.bf16.gmra.mxu0 %v2068
        %v2104 = vpop.f32.mrf.mxu0
        %v2105 = vadd.f32 0.0, %v2104
        %v2106 = vpop.f32.mrf.mxu0
        %v2107 = vpop.f32.mrf.mxu0
        %v2108 = vpop.f32.mrf.mxu0
        %2109 = vdwg.mxu0
        %v2111 = vsel %vm1581, %v2010, 0
        %2113 = vmatprep.subr.bf16.mxu0 0
        %2114 = vmatpush1.bf16.msra.mxu0 0
        %2115 = vmatprep.subr.bf16.mxu0 0
        %2116 = vmatpush1.bf16.msra.mxu0 0
        %2117 = vmatprep.subr.bf16.mxu0 0
        %2118 = vmatpush1.bf16.msra.mxu0 0
        %2119 = vmatprep.subr.bf16.mxu0 0
        %2120 = vmatpush1.bf16.msra.mxu0 0
        %2121 = vmatprep.subr.bf16.mxu0 0
        %2122 = vmatpush1.bf16.msra.mxu0 0
        %2123 = vmatprep.subr.bf16.mxu0 0
        %2124 = vmatpush1.bf16.msra.mxu0 0
        %2125 = vmatprep.subr.bf16.mxu0 0
        %2126 = vmatpush1.bf16.msra.mxu0 0
        %2127 = vmatprep.subr.bf16.mxu0 0
        %2128 = vmatpush1.bf16.msra.mxu0 %v2022
        %2129 = vmatprep.subr.bf16.mxu0 0
        %2130 = vmatpush2.bf16.msra.mxu0 0
        %2131 = vmatprep.subr.bf16.mxu0 0
        %2132 = vmatpush2.bf16.msra.mxu0 0
        %2133 = vmatprep.subr.bf16.mxu0 0
        %2134 = vmatpush2.bf16.msra.mxu0 0
        %2135 = vmatprep.subr.bf16.mxu0 0
        %2136 = vmatpush2.bf16.msra.mxu0 0
        %2137 = vmatprep.subr.bf16.mxu0 0
        %2138 = vmatpush2.bf16.msra.mxu0 0
        %2139 = vmatprep.subr.bf16.mxu0 0
        %2140 = vmatpush2.bf16.msra.mxu0 0
        %2141 = vmatprep.subr.bf16.mxu0 0
        %2142 = vmatpush2.bf16.msra.mxu0 0
        %2143 = vmatprep.subr.bf16.mxu0 0
        %2144 = vmatpush2.bf16.msra.mxu0 0
        %2145 = vmatprep.mubr.bf16.mxu0 0
        %2146 = vmatmul.mubr.bf16.gmra.mxu0 %v2111
        %v2147 = vpop.f32.mrf.mxu0
        %v2148 = vadd.f32 0.0, %v2147
        %v2149 = vpop.f32.mrf.mxu0
        %v2150 = vpop.f32.mrf.mxu0
        %v2151 = vpop.f32.mrf.mxu0
        %2152 = vdwg.mxu0
        %v2154 = vsel %vm1581, %v2011, 0
        %2156 = vmatprep.subr.bf16.mxu0 0
        %2157 = vmatpush1.bf16.msra.mxu0 0
        %2158 = vmatprep.subr.bf16.mxu0 0
        %2159 = vmatpush1.bf16.msra.mxu0 0
        %2160 = vmatprep.subr.bf16.mxu0 0
        %2161 = vmatpush1.bf16.msra.mxu0 0
        %2162 = vmatprep.subr.bf16.mxu0 0
        %2163 = vmatpush1.bf16.msra.mxu0 0
        %2164 = vmatprep.subr.bf16.mxu0 0
        %2165 = vmatpush1.bf16.msra.mxu0 0
        %2166 = vmatprep.subr.bf16.mxu0 0
        %2167 = vmatpush1.bf16.msra.mxu0 0
        %2168 = vmatprep.subr.bf16.mxu0 0
        %2169 = vmatpush1.bf16.msra.mxu0 0
        %2170 = vmatprep.subr.bf16.mxu0 0
        %2171 = vmatpush1.bf16.msra.mxu0 %v2023
        %2172 = vmatprep.subr.bf16.mxu0 0
        %2173 = vmatpush2.bf16.msra.mxu0 0
        %2174 = vmatprep.subr.bf16.mxu0 0
        %2175 = vmatpush2.bf16.msra.mxu0 0
        %2176 = vmatprep.subr.bf16.mxu0 0
        %2177 = vmatpush2.bf16.msra.mxu0 0
        %2178 = vmatprep.subr.bf16.mxu0 0
        %2179 = vmatpush2.bf16.msra.mxu0 0
        %2180 = vmatprep.subr.bf16.mxu0 0
        %2181 = vmatpush2.bf16.msra.mxu0 0
        %2182 = vmatprep.subr.bf16.mxu0 0
        %2183 = vmatpush2.bf16.msra.mxu0 0
        %2184 = vmatprep.subr.bf16.mxu0 0
        %2185 = vmatpush2.bf16.msra.mxu0 0
        %2186 = vmatprep.subr.bf16.mxu0 0
        %2187 = vmatpush2.bf16.msra.mxu0 0
        %2188 = vmatprep.mubr.bf16.mxu0 0
        %2189 = vmatmul.mubr.bf16.gmra.mxu0 %v2154
        %v2190 = vpop.f32.mrf.mxu0
        %v2191 = vadd.f32 0.0, %v2190
        %v2192 = vpop.f32.mrf.mxu0
        %v2193 = vpop.f32.mrf.mxu0
        %v2194 = vpop.f32.mrf.mxu0
        %2195 = vdwg.mxu0
        %v2196 = vsel %vm978, %v2062, 0.0
        %v2197 = vsel %vm978, %v2105, 0.0
        %v2198 = vadd.f32 %v2196, %v2197
        %v2199 = vsel %vm978, %v2148, 0.0
        %v2200 = vadd.f32 %v2198, %v2199
        %v2201 = vsel %vm978, %v2191, 0.0
        %v2202 = vadd.f32 %v2200, %v2201
        %v2203 = vld [vmem:[%s878] sm:$0x1]
        %v2205 = vlaneseq
        %v2206 = vshrl.u32 %v2205, 7
        %v2207 = vsub.s32 0, %v2206
        %v2208 = vrot.slane %v2203, %v2207
        %v2210 = vadd.f32 %v2202, %v2208
        %v2211 = vadd.f32 %v2210, %v924
        %v2212 = vld [vmem:[%s881] sm:$0x1]
        %v2213 = vld [vmem:[%s884] sm:$0x1]
        %v2214 = vsel %vm978, %v2211, 0.0
        %2215 = vadd.xlane.f32.xlu0 %v2214
        %v2216 = vpop.xlane.xlu0 %2215
        %v2217 = vrcp.pop 32.0
        %v2218 = vmul.f32 %v2216, %v2217
        %v2219 = vmul.f32 %v2211, %v2211
        %v2220 = vsel %vm978, %v2219, 0.0
        %2221 = vadd.xlane.f32.xlu0 %v2220
        %v2222 = vpop.xlane.xlu0 %2221
        %v2223 = vmul.f32 %v2222, %v2217
        %v2224 = vsub.f32 %v2211, %v2218
        %v2225 = vmul.f32 %v2218, %v2218
        %v2226 = vsub.f32 %v2223, %v2225
        %v2227 = vadd.f32 %v2226, 1e-05
        %v2228 = vrsqrt.pop %v2227
        %v2229 = vmul.f32 %v2224, %v2228
        %v2231 = vlaneseq
        %v2232 = vshrl.u32 %v2231, 7
        %v2233 = vsub.s32 0, %v2232
        %v2234 = vrot.slane %v2212, %v2233
        %v2236 = vmul.f32 %v2229, %v2234
        %v2238 = vlaneseq
        %v2239 = vshrl.u32 %v2238, 7
        %v2240 = vsub.s32 0, %v2239
        %v2241 = vrot.slane %v2213, %v2240
        %v2243 = vadd.f32 %v2236, %v2241
        %v2244 = vpack.c.bf16 %v2243, %v2243
        %v2245 = vld [vmem:[%s889] sm:$0xff]
        %v2246 = vld [vmem:[%s889 + $0x8] sm:$0xff]
        %v2247 = vld [vmem:[%s889 + $0x10] sm:$0xff]
        %v2248 = vld [vmem:[%s889 + $0x18] sm:$0xff]
        %v2249 = vpack.c.bf16 %v2246, %v2245
        %v2250 = vpack.c.bf16 %v2248, %v2247
        %v2251 = vld [vmem:[%s892] sm:$0x1]
        %v2253 = vlaneseq
        %v2254 = vshrl.u32 %v2253, 7
        %v2255 = vsub.s32 0, %v2254
        %v2256 = vrot.slane %v2251, %v2255
        %v2259 = vsel %vm978, %v2244, 0
        %2261 = vmatprep.subr.bf16.mxu0 0
        %2262 = vmatpush1.bf16.msra.mxu0 0
        %2263 = vmatprep.subr.bf16.mxu0 0
        %2264 = vmatpush1.bf16.msra.mxu0 0
        %2265 = vmatprep.subr.bf16.mxu0 0
        %2266 = vmatpush1.bf16.msra.mxu0 0
        %2267 = vmatprep.subr.bf16.mxu0 0
        %2268 = vmatpush1.bf16.msra.mxu0 0
        %2269 = vmatprep.subr.bf16.mxu0 0
        %2270 = vmatpush1.bf16.msra.mxu0 0
        %2271 = vmatprep.subr.bf16.mxu0 0
        %2272 = vmatpush1.bf16.msra.mxu0 0
        %2273 = vmatprep.subr.bf16.mxu0 0
        %2274 = vmatpush1.bf16.msra.mxu0 %v2250
        %2275 = vmatprep.subr.bf16.mxu0 0
        %2276 = vmatpush1.bf16.msra.mxu0 %v2249
        %2277 = vmatprep.subr.bf16.mxu0 0
        %2278 = vmatpush2.bf16.msra.mxu0 0
        %2279 = vmatprep.subr.bf16.mxu0 0
        %2280 = vmatpush2.bf16.msra.mxu0 0
        %2281 = vmatprep.subr.bf16.mxu0 0
        %2282 = vmatpush2.bf16.msra.mxu0 0
        %2283 = vmatprep.subr.bf16.mxu0 0
        %2284 = vmatpush2.bf16.msra.mxu0 0
        %2285 = vmatprep.subr.bf16.mxu0 0
        %2286 = vmatpush2.bf16.msra.mxu0 0
        %2287 = vmatprep.subr.bf16.mxu0 0
        %2288 = vmatpush2.bf16.msra.mxu0 0
        %2289 = vmatprep.subr.bf16.mxu0 0
        %2290 = vmatpush2.bf16.msra.mxu0 0
        %2291 = vmatprep.subr.bf16.mxu0 0
        %2292 = vmatpush2.bf16.msra.mxu0 0
        %2293 = vmatprep.mubr.bf16.mxu0 0
        %2294 = vmatmul.mubr.bf16.gmra.mxu0 %v2259
        %v2295 = vpop.f32.mrf.mxu0
        %v2296 = vadd.f32 %v2256, %v2295
        %v2297 = vpop.f32.mrf.mxu0
        %v2298 = vpop.f32.mrf.mxu0
        %v2299 = vpop.f32.mrf.mxu0
        %2300 = vdwg.mxu0
        %v2301 = vmax.f32 %v2296, 0.0
        %v2302 = vpack.c.bf16 %v2301, %v2301
        %v2303 = vld [vmem:[%s897] sm:$0xff]
        %v2304 = vld [vmem:[%s897 + $0x8] sm:$0xff]
        %v2305 = vld [vmem:[%s897 + $0x10] sm:$0xff]
        %v2306 = vld [vmem:[%s897 + $0x18] sm:$0xff]
        %v2307 = vld [vmem:[%s897 + $0x20] sm:$0xff]
        %v2308 = vld [vmem:[%s897 + $0x28] sm:$0xff]
        %v2309 = vld [vmem:[%s897 + $0x30] sm:$0xff]
        %v2310 = vld [vmem:[%s897 + $0x38] sm:$0xff]
        %v2311 = vpack.c.bf16 %v2304, %v2303
        %v2312 = vpack.c.bf16 %v2306, %v2305
        %v2313 = vpack.c.bf16 %v2308, %v2307
        %v2314 = vpack.c.bf16 %v2310, %v2309
        %v2315 = vld [vmem:[%s900] sm:$0x1]
        %v2317 = vlaneseq
        %v2318 = vshrl.u32 %v2317, 7
        %v2319 = vsub.s32 0, %v2318
        %v2320 = vrot.slane %v2315, %v2319
        %vm2322 = vcmask 523264
        %v2324 = vsel %vm2322, %v2302, 0
        %2326 = vmatprep.subr.bf16.mxu0 0
        %2327 = vmatpush1.bf16.msra.mxu0 0
        %2328 = vmatprep.subr.bf16.mxu0 0
        %2329 = vmatpush1.bf16.msra.mxu0 0
        %2330 = vmatprep.subr.bf16.mxu0 0
        %2331 = vmatpush1.bf16.msra.mxu0 0
        %2332 = vmatprep.subr.bf16.mxu0 0
        %2333 = vmatpush1.bf16.msra.mxu0 0
        %2334 = vmatprep.subr.bf16.mxu0 0
        %2335 = vmatpush1.bf16.msra.mxu0 %v2314
        %2336 = vmatprep.subr.bf16.mxu0 0
        %2337 = vmatpush1.bf16.msra.mxu0 %v2313
        %2338 = vmatprep.subr.bf16.mxu0 0
        %2339 = vmatpush1.bf16.msra.mxu0 %v2312
        %2340 = vmatprep.subr.bf16.mxu0 0
        %2341 = vmatpush1.bf16.msra.mxu0 %v2311
        %2342 = vmatprep.subr.bf16.mxu0 0
        %2343 = vmatpush2.bf16.msra.mxu0 0
        %2344 = vmatprep.subr.bf16.mxu0 0
        %2345 = vmatpush2.bf16.msra.mxu0 0
        %2346 = vmatprep.subr.bf16.mxu0 0
        %2347 = vmatpush2.bf16.msra.mxu0 0
        %2348 = vmatprep.subr.bf16.mxu0 0
        %2349 = vmatpush2.bf16.msra.mxu0 0
        %2350 = vmatprep.subr.bf16.mxu0 0
        %2351 = vmatpush2.bf16.msra.mxu0 0
        %2352 = vmatprep.subr.bf16.mxu0 0
        %2353 = vmatpush2.bf16.msra.mxu0 0
        %2354 = vmatprep.subr.bf16.mxu0 0
        %2355 = vmatpush2.bf16.msra.mxu0 0
        %2356 = vmatprep.subr.bf16.mxu0 0
        %2357 = vmatpush2.bf16.msra.mxu0 0
        %2358 = vmatprep.mubr.bf16.mxu0 0
        %2359 = vmatmul.mubr.bf16.gmra.mxu0 %v2324
        %v2360 = vpop.f32.mrf.mxu0
        %v2361 = vadd.f32 %v2320, %v2360
        %v2362 = vpop.f32.mrf.mxu0
        %v2363 = vpop.f32.mrf.mxu0
        %v2364 = vpop.f32.mrf.mxu0
        %2365 = vdwg.mxu0
        %v2366 = vadd.f32 %v2361, %v2243
        %v2367 = vld [vmem:[%s903] sm:$0x1]
        %v2368 = vld [vmem:[%s906] sm:$0x1]
        %v2369 = vsel %vm978, %v2366, 0.0
        %2370 = vadd.xlane.f32.xlu0 %v2369
        %v2371 = vpop.xlane.xlu0 %2370
        %v2372 = vmul.f32 %v2371, %v2217
        %v2373 = vmul.f32 %v2366, %v2366
        %v2374 = vsel %vm978, %v2373, 0.0
        %2375 = vadd.xlane.f32.xlu0 %v2374
        %v2376 = vpop.xlane.xlu0 %2375
        %v2377 = vmul.f32 %v2376, %v2217
        %v2378 = vsub.f32 %v2366, %v2372
        %v2379 = vmul.f32 %v2372, %v2372
        %v2380 = vsub.f32 %v2377, %v2379
        %v2381 = vadd.f32 %v2380, 1e-05
        %v2382 = vrsqrt.pop %v2381
        %v2383 = vmul.f32 %v2378, %v2382
        %v2385 = vlaneseq
        %v2386 = vshrl.u32 %v2385, 7
        %v2387 = vsub.s32 0, %v2386
        %v2388 = vrot.slane %v2367, %v2387
        %v2390 = vmul.f32 %v2383, %v2388
        %v2392 = vlaneseq
        %v2393 = vshrl.u32 %v2392, 7
        %v2394 = vsub.s32 0, %v2393
        %v2395 = vrot.slane %v2368, %v2394
        %v2397 = vadd.f32 %v2390, %v2395
        %2398 = vst.msk [vmem:[%s825] sm:$0xff] %vm978, %v2397
        %s2399 = sand.u32 %s522, 1
        %s2400 = scalar_lea.sflag [#allocation3], %s2399
        %s2401 = sand.u32 %s522, 1
        %s2402 = smul.addr %s2401, 8
        %s2403 = scalar_lea.vmem [#allocation2], %s2402
        %p2404 = scmp.lt.s32.totalorder %s38, 1
        %s2405 = scalar_select %p2404, %s38, 1
        %p2406 = scmp.lt.s32.totalorder %s39, 1
        %s2407 = scalar_select %p2406, %s39, 1
        %s2408 = smul.addr %s2407, 4
        %s2409 = smul.addr %s2405, 8
        %s2410 = sadd.s32 %s2408, %s2409
        %s2411 = smul.addr %s2410, 8
        %s2412 = scalar_lea.vmem %s19, %s2411
        // Predicated region
        $region97: #{encoder_forward.1} parent=91 // pred_check
          %p2413 = pneg %p532
        $region98: #{encoder_forward.1} parent=91 // pred_check_branch
          %2415 = sbr.rel (%p2413) target = $region100
        $region99: #{encoder_forward.1} parent=91 // pred_region
          %s2417 = ssub.s32 128, 128
          %2418 = vsyncadd %s2400, %s2417
          %s2419 = smul.addr %s38, 128
          %s2420 = scalar_lea.hbm %s18, %s2419
          %s2422 = sshll.u32 %s2403, 4
          %s2423 = int_to_ptr.vmem [resolvable:$true] %s2422
          %2425 = dma.vmem_to_hbm [thread:$0]  %s2423, 128, %s2420, %s2400
        $region100: #{encoder_forward.1} parent=91 // pred_fallthru
          _
        // Predicated region
        $region101: #{encoder_forward.1} parent=91 // pred_check
          %p2426 = pneg %p560
        $region102: #{encoder_forward.1} parent=91 // pred_check_branch
          %2428 = sbr.rel (%p2426) target = $region104
        $region103: #{encoder_forward.1} parent=91 // pred_region
          _
        $region104: #{encoder_forward.1} parent=91 // pred_fallthru
          _
      $region92: #{encoder_forward.1} parent=5 // pred_fallthru
        _
      %p2429 = scmp.le.s32.totalorder 2, %s29
      // Predicated region
      $region105: #{encoder_forward.1} parent=5 // pred_check
        %p2430 = pneg %p2429
      $region106: #{encoder_forward.1} parent=5 // pred_check_branch
        %2432 = sbr.rel (%p2430) target = $region108
      $region107: #{encoder_forward.1} parent=5 // pred_region
        %s2433 = ssub.s32 %s29, 2
        // Predicated region
        $region109: #{encoder_forward.1} parent=107 // pred_check
          %p2434 = pneg %p538
        $region110: #{encoder_forward.1} parent=107 // pred_check_branch
          %2436 = sbr.rel (%p2434) target = $region112
        $region111: #{encoder_forward.1} parent=107 // pred_region
          %s2437 = sand.u32 %s523, 1
          %s2438 = scalar_lea.sflag [#allocation3], %s2437
          %s2439 = sand.u32 %s523, 1
          %s2440 = smul.addr %s2439, 8
          %s2441 = scalar_lea.vmem [#allocation2], %s2440
          %2442 = dma.done %s2438, 128
        $region112: #{encoder_forward.1} parent=107 // pred_fallthru
          _
        // Predicated region
        $region113: #{encoder_forward.1} parent=107 // pred_check
          %p2443 = pneg %p566
        $region114: #{encoder_forward.1} parent=107 // pred_check_branch
          %2445 = sbr.rel (%p2443) target = $region116
        $region115: #{encoder_forward.1} parent=107 // pred_region
          %p2446 = scmp.lt.s32.totalorder %s40, 1
          %s2447 = scalar_select %p2446, %s40, 1
          %p2448 = scmp.lt.s32.totalorder %s41, 1
          %s2449 = scalar_select %p2448, %s41, 1
          %s2450 = smul.addr %s2449, 4
          %s2451 = smul.addr %s2447, 8
          %s2452 = sadd.s32 %s2450, %s2451
          %s2453 = smul.addr %s2452, 8
          %s2454 = scalar_lea.vmem %s19, %s2453
        $region116: #{encoder_forward.1} parent=107 // pred_fallthru
          _
      $region108: #{encoder_forward.1} parent=5 // pred_fallthru
        _
    $region6: #{encoder_forward.1} parent=1 // loop_footer
      %s33 = sadd.s32 1, %s29
    $region7: #{encoder_forward.1} parent=1 // loop_footer_branch
      %28 = sbr.rel target = $region3
    $region8: #{encoder_forward.1} parent=1 // loop_exit
      _
    %2455 = vsyncpa [#allocation3], 1
    %s2456 = scalar_lea.sflag [#allocation3], 1
    %2457 = vsyncpa %s2456, 1

</llo_original>
